<compile_context>
chip_gen: v7x
topology: tpu7x:2x2x1
jax: 0.10.0
libtpu: 0.0.40
codegen_flags: <defaults>
</compile_context>

<pallas_src>
import functools

import jax
import jax.numpy as jnp
from jax import lax
from jax.experimental import pallas as pl
from jax.experimental.pallas import tpu as pltpu


def _fp_kernel(num_layers, idx_bits, compute_dtype,
               unknown_t_ref, known_ref, kf_ref, uf_ref, *rest):
    out_ref = rest[-1]
    params = rest[:-1]          # w0a, w0b, b0, w1, b1, ...

    ut = unknown_t_ref[0]       # (3, tn)   f32   (point axis lane-dense)
    kz = known_ref[0]           # (m, 3)    f32
    kf = kf_ref[0]              # (C2, m)   compute_dtype
    uf = uf_ref[0]              # (C1, tn)  compute_dtype

    m = kz.shape[0]
    tn = ut.shape[1]

    # ---- pairwise squared distances, (m, tn): pure VPU (K=3 contraction) ----
    kk = (kz[:, 0:1] * kz[:, 0:1] + kz[:, 1:2] * kz[:, 1:2]
          + kz[:, 2:3] * kz[:, 2:3])                                 # (m, 1)
    uu = (ut[0:1, :] * ut[0:1, :] + ut[1:2, :] * ut[1:2, :]
          + ut[2:3, :] * ut[2:3, :])                                 # (1, tn)
    cross = (kz[:, 0:1] * ut[0:1, :] + kz[:, 1:2] * ut[1:2, :]
             + kz[:, 2:3] * ut[2:3, :])                              # (m, tn)
    d = jnp.maximum(kk + uu - 2.0 * cross, 0.0)                      # (m, tn), >= +0

    # ---- packed-key 3-NN: one cross-sublane min per neighbour ----
    # d >= 0 so its int32 bit pattern is order-preserving; the low idx_bits
    # mantissa bits are replaced by the known-point index (distance quantised
    # by <= m ulps, ~2^-18 relative -- far below the bf16 interp weights).
    iota = lax.broadcasted_iota(jnp.int32, (m, tn), 0)
    idx_mask = jnp.int32((1 << idx_bits) - 1)
    keep_mask = jnp.int32(-(1 << idx_bits))                          # == ~idx_mask
    key = (pltpu.bitcast(d, jnp.int32) & keep_mask) | iota           # (m, tn) i32
    big = jnp.int32(2 ** 31 - 1)

    w_acc = jnp.zeros((m, tn), jnp.float32)
    norm = jnp.zeros((1, tn), jnp.float32)
    for _ in range(3):                        # unrolled; assumes m >= 3
        kmin = jnp.min(key, axis=0, keepdims=True)                   # (1, tn)
        sel = kmin & idx_mask                                        # argmin index
        dmin = pltpu.bitcast(kmin & keep_mask, jnp.float32)          # min distance
        recip = 1.0 / (dmin + 1e-8)                                  # (1, tn) only
        oh = iota == sel                                             # (m, tn)
        w_acc = w_acc + jnp.where(oh, recip, 0.0)
        norm = norm + recip
        key = jnp.where(oh, big, key)
    inv_norm = pl.reciprocal(norm, approx=True)                      # (1, tn)

    # ---- interpolation: canonical (C2, m) @ (m, tn) on the MXU; the 1/norm
    #      scale is deferred to the (C2, tn) result (C2*tn muls, no tn*m div) ----
    interp = lax.dot_general(kf, w_acc.astype(compute_dtype),
                             (((1,), (0,)), ((), ())),
                             preferred_element_type=jnp.float32)     # (C2, tn)
    interp = interp * inv_norm

    # ---- SharedMLP layer 0: concat([interp, skip]) as a split matmul ----
    w0a = params[0][...]         # (H0, C2)  compute_dtype
    w0b = params[1][...]         # (H0, C1)  compute_dtype
    b0 = params[2][...]          # (H0, 1)   f32
    x = lax.dot_general(w0a, interp.astype(compute_dtype),
                        (((1,), (0,)), ((), ())),
                        preferred_element_type=jnp.float32)          # (H0, tn)
    x = x + lax.dot_general(w0b, uf, (((1,), (0,)), ((), ())),
                            preferred_element_type=jnp.float32)
    x = jnp.maximum(x + b0, 0.0)

    # ---- remaining 1x1 conv + BN(eval) + ReLU layers (BN folded in W, b) ----
    for layer in range(1, num_layers):
        w = params[1 + 2 * layer][...]       # (Cout, Cin) compute_dtype
        b = params[2 + 2 * layer][...]       # (Cout, 1)   f32
        x = lax.dot_general(w, x.astype(compute_dtype),
                            (((1,), (0,)), ((), ())),
                            preferred_element_type=jnp.float32)      # (Cout, tn)
        x = jnp.maximum(x + b, 0.0)

    out_ref[0] = x.astype(out_ref.dtype)                             # (out_c, tn)


def _pad(x, to):
    return -(-x // to) * to


def _vmem_capacity_bytes():
    """Physical VMEM of the attached chip; conservative (v7x) fallback."""
    cap = None
    try:
        info = pltpu.get_tpu_info()
        for attr in ("vmem_capacity_bytes", "vmem_bytes", "vmem_size_bytes"):
            v = getattr(info, attr, None)
            if v:
                cap = int(v)
                break
    except Exception:
        cap = None
    if not cap:
        cap = 64 * 1024 * 1024
    return max(min(cap, 256 * 1024 * 1024), 48 * 1024 * 1024)


def _vmem_estimate(tile_n, m, c1, c2, widths, itemsize):
    """Per-step VMEM working-set estimate (bytes), using padded block sizes."""
    f32 = 4
    tn = _pad(tile_n, 128)
    m8 = _pad(m, 8)
    # 3-NN phase: d, packed key, iota, one-hot / where temps, w_acc (~6 live)
    pair = 6 * m8 * tn * f32
    # double-buffered per-tile inputs / output
    io = 2 * (_pad(3, 8) * tn * f32 + _pad(c1, 8) * tn * itemsize
              + _pad(widths[-1], 8) * tn * f32)
    # (near-)constant blocks: known xyz, known feats, MLP weights + biases
    const = 2 * (m8 * 128 * f32 + _pad(c2, 8) * _pad(m, 128) * itemsize)
    const += 2 * sum(_pad(co, 8) * _pad(ci, 128) * itemsize + _pad(co, 8) * 128 * f32
                     for ci, co in zip(widths[:-1], widths[1:]))
    # MLP activations (two layers live at a time)
    act = 2 * _pad(max(widths), 8) * tn * f32
    return pair + io + const + act


def _choose_tile_n(n, m, c1, c2, widths, itemsize, budget_bytes):
    """Biggest tile under the budget; prefer full-n / 256-lane multiples
    (fills the N dim of the 2x256 MXU on v6e/v7x, still 128-aligned for v5e),
    then fall back to 128-lane multiples."""
    def fits(t):
        return _vmem_estimate(t, m, c1, c2, widths, itemsize) <= budget_bytes
    mult256 = [t for t in range(256, n, 256) if n % t == 0]
    mult128 = [t for t in range(128, n, 128) if n % t == 0]
    for t in sorted(set([n] + mult256), reverse=True):
        if fits(t):
            return t
    for t in sorted(set(mult128), reverse=True):
        if fits(t):
            return t
    return min([n] + mult128)


def pointnet2_fp_forward(unknown, known, unknow_feats, known_feats, layer_params,
                         *, tile_n=None, compute_dtype=jnp.bfloat16,
                         out_dtype=jnp.float32, vmem_budget_bytes=None,
                         single_buffer_constants=None):
    """layer_params: list of (W_eff (Cin, Cout), b_eff (Cout, 1)) per MLP layer,
    with eval-mode BN already folded in.  Returns (B, mlp[-1], n)."""
    B, n, _ = unknown.shape
    m = known.shape[1]
    C2 = known_feats.shape[1]
    C1 = unknow_feats.shape[1]
    num_layers = len(layer_params)
    widths = [C2 + C1] + [w.shape[1] for (w, _) in layer_params]
    out_c = widths[-1]
    assert layer_params[0][0].shape[0] == C2 + C1
    assert m >= 3, "m < 3 not handled (pointops duplicates neighbours)"
    idx_bits = max(1, (m - 1).bit_length())
    assert idx_bits <= 16, "very large m needs the m-blocked 3-NN variant"
    # TODO(synk): for m >= a few thousand, block the 3-NN over m with a running
    # top-3 carry instead of the dense (m, tile_n) weight matrix.

    cap = _vmem_capacity_bytes()
    if vmem_budget_bytes is None:
        vmem_budget_bytes = max(int(cap * 0.55), 24 * 1024 * 1024)
    itemsize = jnp.dtype(compute_dtype).itemsize
    if tile_n is None:
        tile_n = _choose_tile_n(n, m, C1, C2, widths, itemsize, vmem_budget_bytes)
    # TODO(synk): ragged last tile (n % tile_n != 0) needs padding / masking.
    assert n % tile_n == 0, (n, tile_n)

    # Channel-first feature tensors go in untouched; only the tiny xyz tensor
    # is transposed so the point axis is lane-dense inside the kernel.
    unknown_t = jnp.swapaxes(unknown, 1, 2).astype(jnp.float32)      # (B, 3, n)
    known_xyz = known.astype(jnp.float32)                            # (B, m, 3)
    kf = known_feats.astype(compute_dtype)                           # (B, C2, m)
    uf = unknow_feats.astype(compute_dtype)                          # (B, C1, n)

    # Canonical MXU operand layout: every weight goes in as (Cout, Cin); the
    # layer-0 weight is split at C2 so the channel concat is a split matmul.
    w0, b0 = layer_params[0]
    w0t = jnp.transpose(w0)                                          # (H0, C2+C1)
    flat_params = [w0t[:, :C2].astype(compute_dtype),
                   w0t[:, C2:].astype(compute_dtype),
                   b0.astype(jnp.float32)]
    for (w, b) in layer_params[1:]:
        flat_params += [jnp.transpose(w).astype(compute_dtype),
                        b.astype(jnp.float32)]

    # Single-buffer the constant-index-map blocks only when their second
    # buffer would eat a meaningful VMEM slice (v7x-sized problems); the only
    # cost is one exposed DMA per batch transition.
    if single_buffer_constants is None:
        const_bytes = (_pad(m, 8) * 128 * 4 + _pad(C2, 8) * _pad(m, 128) * itemsize
                       + sum(int(p.size) * p.dtype.itemsize for p in flat_params))
        single_buffer_constants = const_bytes > vmem_budget_bytes // 8
    const_kw = dict(pipeline_mode=pl.Buffered(1)) if single_buffer_constants else {}

    in_specs = [
        pl.BlockSpec((1, 3, tile_n), lambda b, i: (b, 0, i)),         # xyz tile
        pl.BlockSpec((1, m, 3), lambda b, i: (b, 0, 0), **const_kw),  # known xyz
        pl.BlockSpec((1, C2, m), lambda b, i: (b, 0, 0), **const_kw), # known feats
        pl.BlockSpec((1, C1, tile_n), lambda b, i: (b, 0, i)),        # skip feats
    ]
    for p in flat_params:
        in_specs.append(pl.BlockSpec(p.shape, lambda b, i: (0, 0), **const_kw))

    out_spec = pl.BlockSpec((1, out_c, tile_n), lambda b, i: (b, 0, i))

    kernel = functools.partial(_fp_kernel, num_layers, idx_bits, compute_dtype)

    # Advisory cost estimate for XLA's scheduler.
    mlp_flops = 2 * sum(ci * co for ci, co in zip(widths[:-1], widths[1:]))
    flops = int(B * n * (9 * m + 2 * m * C2 + mlp_flops))
    bytes_accessed = int(
        unknown_t.size * 4 + known_xyz.size * 4
        + kf.size * itemsize + uf.size * itemsize
        + sum(int(p.size) * p.dtype.itemsize for p in flat_params)
        + B * n * out_c * jnp.dtype(out_dtype).itemsize)
    cost = pl.CostEstimate(flops=flops, transcendentals=int(B * n * 4),
                           bytes_accessed=bytes_accessed)

    est = _vmem_estimate(tile_n, m, C1, C2, widths, itemsize)
    vmem_limit = int(min(max(2 * est, 16 * 1024 * 1024), int(cap * 0.75)))

    out = pl.pallas_call(
        kernel,
        out_shape=jax.ShapeDtypeStruct((B, out_c, n), out_dtype),
        grid_spec=pltpu.PrefetchScalarGridSpec(
            num_scalar_prefetch=0,
            grid=(B, n // tile_n),
            in_specs=in_specs,
            out_specs=out_spec,
        ),
        compiler_params=pltpu.CompilerParams(
            dimension_semantics=("parallel", "parallel"),
            vmem_limit_bytes=vmem_limit),
        cost_estimate=cost,
    )(unknown_t, known_xyz, kf, uf, *flat_params)

    return out                    # (B, mlp[-1], n) — PyTorch layout, no transpose


def _reference(unknown, known, unknow_feats, known_feats, layer_params,
               compute_dtype):
    """Pure-JAX reference mirroring the module forward (BN folded, eval).
    Uses the same ||u||^2 + ||k||^2 - 2 u.k expansion and the same bf16 casts
    as the kernel; the 1/norm weight normalisation is algebraically deferred
    to the interpolated features (mathematically identical to the module's
    `dist_recip / norm` weighting)."""
    m = known.shape[1]
    uu = (unknown[:, :, 0:1] * unknown[:, :, 0:1]
          + unknown[:, :, 1:2] * unknown[:, :, 1:2]
          + unknown[:, :, 2:3] * unknown[:, :, 2:3])                 # (B, n, 1)
    kk = jnp.sum(known * known, axis=-1)[:, None, :]                 # (B, 1, m)
    cross = (unknown[:, :, None, 0] * known[:, None, :, 0]
             + unknown[:, :, None, 1] * known[:, None, :, 1]
             + unknown[:, :, None, 2] * known[:, None, :, 2])        # (B, n, m)
    d = jnp.maximum(uu + kk - 2.0 * cross, 0.0)

    neg_d, idx = lax.top_k(-d, 3)                     # (B, n, 3)
    dist = -neg_d
    recip = 1.0 / (dist + 1e-8)
    norm = jnp.sum(recip, axis=2, keepdims=True)                     # (B, n, 1)
    onehot = jax.nn.one_hot(idx, m, dtype=jnp.float32)               # (B, n, 3, m)
    w_full = jnp.einsum('bnk,bnkm->bnm', recip, onehot)              # un-normalised
    interp = jnp.einsum('bnm,bcm->bnc', w_full.astype(compute_dtype),
                        known_feats.astype(compute_dtype),
                        preferred_element_type=jnp.float32) / norm   # (B, n, C2)
    x = jnp.concatenate([interp, jnp.transpose(unknow_feats, (0, 2, 1))], axis=-1)
    for (wl, bl) in layer_params:
        y = jnp.einsum('bnc,co->bno', x.astype(compute_dtype),
                       wl.astype(compute_dtype),
                       preferred_element_type=jnp.float32)
        x = jnp.maximum(y + bl[:, 0][None, None, :], 0.0)
    return jnp.transpose(x, (0, 2, 1))                # (B, C_out, n)


def _make_params(mlp, key):
    """Deterministic Conv2d(1x1, bias=False) + BatchNorm2d(eval) params,
    BN folded into (W_eff (cin, cout), b_eff (cout, 1)) per layer."""
    params = []
    for cin, cout in zip(mlp[:-1], mlp[1:]):
        key, k1, k2, k3 = jax.random.split(key, 4)
        w = jax.random.normal(k1, (cout, cin), jnp.float32) * 0.1
        gamma = 1.0 + 0.1 * jax.random.normal(k2, (cout,), jnp.float32)
        beta = 0.1 * jax.random.normal(k3, (cout,), jnp.float32)
        running_mean = jnp.zeros((cout,), jnp.float32)
        running_var = jnp.ones((cout,), jnp.float32)
        eps = 1e-5
        scale = gamma / jnp.sqrt(running_var + eps)
        shift = beta - running_mean * scale
        w_eff = (w * scale[:, None]).T                # (cin, cout)
        b_eff = shift[:, None]                        # (cout, 1)
        params.append((w_eff, b_eff))
    return params


if __name__ == "__main__":
    key = jax.random.PRNGKey(0)
    B, n, m = 2, 256, 64        # n points to propagate to, m known points
    C1, C2 = 16, 32             # skip-feat channels, known-feat channels
    mlp = [C2 + C1, 64, 32]     # SharedMLP([48, 64, 32])

    k_u, k_k, k_uf, k_kf, k_p = jax.random.split(key, 5)
    unknown = jax.random.normal(k_u, (B, n, 3), jnp.float32)
    known = jax.random.normal(k_k, (B, m, 3), jnp.float32)
    unknow_feats = jax.random.normal(k_uf, (B, C1, n), jnp.float32)
    known_feats = jax.random.normal(k_kf, (B, C2, m), jnp.float32)

    layer_params = _make_params(mlp, k_p)

    # No hand-forced tile_n: with B >= 2 the batch axis already feeds both
    # TensorCores, so the chooser picks the largest (256-multiple / full-n)
    # lane tile that fits the per-chip VMEM budget.
    out = pointnet2_fp_forward(unknown, known, unknow_feats, known_feats,
                               layer_params, compute_dtype=jnp.bfloat16)
    out = jax.block_until_ready(out)

    ref = _reference(unknown, known, unknow_feats, known_feats, layer_params,
                     compute_dtype=jnp.bfloat16)
    assert out.shape == (B, mlp[-1], n), out.shape
    max_err = float(jnp.max(jnp.abs(out - ref)))
    assert jnp.allclose(out, ref, atol=5e-3, rtol=5e-3), max_err

    print("KERNEL_OK")
</pallas_src>

<mosaic_0001>
module attributes {stable_mosaic.version = 11 : i64} {
  func.func @_fp_kernel(%arg0: i32, %arg1: i32, %arg2: memref<1x3x256xf32, #tpu.memory_space<vmem>>, %arg3: memref<1x64x3xf32, #tpu.memory_space<vmem>>, %arg4: memref<1x32x64xbf16, #tpu.memory_space<vmem>>, %arg5: memref<1x16x256xbf16, #tpu.memory_space<vmem>>, %arg6: memref<64x32xbf16, #tpu.memory_space<vmem>>, %arg7: memref<64x16xbf16, #tpu.memory_space<vmem>>, %arg8: memref<64x1xf32, #tpu.memory_space<vmem>>, %arg9: memref<32x64xbf16, #tpu.memory_space<vmem>>, %arg10: memref<32x1xf32, #tpu.memory_space<vmem>>, %arg11: memref<1x32x256xf32, #tpu.memory_space<vmem>>) attributes {dimension_semantics = [#tpu.dimension_semantics<parallel>, #tpu.dimension_semantics<parallel>], iteration_bounds = array<i64: 2, 1>, scalar_prefetch = 0 : i64, scratch_operands = 0 : i64, tpu.core_type = #tpu.core_type<tc>, window_params = [{transform_indices = @transform_0, window_bounds = array<i64: 1, 3, 256>}, {transform_indices = @transform_1, window_bounds = array<i64: 1, 64, 3>}, {transform_indices = @transform_2, window_bounds = array<i64: 1, 32, 64>}, {transform_indices = @transform_3, window_bounds = array<i64: 1, 16, 256>}, {pipeline_mode = #tpu.pipeline_mode<synchronous>, transform_indices = @transform_4, window_bounds = array<i64: 64, 32>}, {pipeline_mode = #tpu.pipeline_mode<synchronous>, transform_indices = @transform_5, window_bounds = array<i64: 64, 16>}, {pipeline_mode = #tpu.pipeline_mode<synchronous>, transform_indices = @transform_6, window_bounds = array<i64: 64, 1>}, {pipeline_mode = #tpu.pipeline_mode<synchronous>, transform_indices = @transform_7, window_bounds = array<i64: 32, 64>}, {pipeline_mode = #tpu.pipeline_mode<synchronous>, transform_indices = @transform_8, window_bounds = array<i64: 32, 1>}, {transform_indices = @transform_9, window_bounds = array<i64: 1, 32, 256>}]} {
    %c0 = arith.constant 0 : index
    %c0_0 = arith.constant 0 : index
    %c0_1 = arith.constant 0 : index
    %0 = vector.load %arg2[%c0, %c0_0, %c0_1] : memref<1x3x256xf32, #tpu.memory_space<vmem>>, vector<1x3x256xf32>
    %1 = vector.shape_cast %0 : vector<1x3x256xf32> to vector<3x256xf32>
    %c0_2 = arith.constant 0 : index
    %c0_3 = arith.constant 0 : index
    %c0_4 = arith.constant 0 : index
    %2 = vector.load %arg3[%c0_2, %c0_3, %c0_4] : memref<1x64x3xf32, #tpu.memory_space<vmem>>, vector<1x64x3xf32>
    %3 = vector.shape_cast %2 : vector<1x64x3xf32> to vector<64x3xf32>
    %c0_5 = arith.constant 0 : index
    %c0_6 = arith.constant 0 : index
    %c0_7 = arith.constant 0 : index
    %4 = vector.load %arg4[%c0_5, %c0_6, %c0_7] : memref<1x32x64xbf16, #tpu.memory_space<vmem>>, vector<1x32x64xbf16>
    %5 = vector.shape_cast %4 : vector<1x32x64xbf16> to vector<32x64xbf16>
    %c0_8 = arith.constant 0 : index
    %c0_9 = arith.constant 0 : index
    %c0_10 = arith.constant 0 : index
    %6 = vector.load %arg5[%c0_8, %c0_9, %c0_10] : memref<1x16x256xbf16, #tpu.memory_space<vmem>>, vector<1x16x256xbf16>
    %7 = vector.shape_cast %6 : vector<1x16x256xbf16> to vector<16x256xbf16>
    %8 = vector.extract_strided_slice %3 {offsets = [0, 0], sizes = [64, 1], strides = [1, 1]} : vector<64x3xf32> to vector<64x1xf32>
    %9 = vector.extract_strided_slice %3 {offsets = [0, 0], sizes = [64, 1], strides = [1, 1]} : vector<64x3xf32> to vector<64x1xf32>
    %10 = arith.mulf %8, %9 : vector<64x1xf32>
    %11 = vector.extract_strided_slice %3 {offsets = [0, 1], sizes = [64, 1], strides = [1, 1]} : vector<64x3xf32> to vector<64x1xf32>
    %12 = vector.extract_strided_slice %3 {offsets = [0, 1], sizes = [64, 1], strides = [1, 1]} : vector<64x3xf32> to vector<64x1xf32>
    %13 = arith.mulf %11, %12 : vector<64x1xf32>
    %14 = arith.addf %10, %13 : vector<64x1xf32>
    %15 = vector.extract_strided_slice %3 {offsets = [0, 2], sizes = [64, 1], strides = [1, 1]} : vector<64x3xf32> to vector<64x1xf32>
    %16 = vector.extract_strided_slice %3 {offsets = [0, 2], sizes = [64, 1], strides = [1, 1]} : vector<64x3xf32> to vector<64x1xf32>
    %17 = arith.mulf %15, %16 : vector<64x1xf32>
    %18 = arith.addf %14, %17 : vector<64x1xf32>
    %19 = vector.extract_strided_slice %1 {offsets = [0, 0], sizes = [1, 256], strides = [1, 1]} : vector<3x256xf32> to vector<1x256xf32>
    %20 = vector.extract_strided_slice %1 {offsets = [0, 0], sizes = [1, 256], strides = [1, 1]} : vector<3x256xf32> to vector<1x256xf32>
    %21 = arith.mulf %19, %20 : vector<1x256xf32>
    %22 = vector.extract_strided_slice %1 {offsets = [1, 0], sizes = [1, 256], strides = [1, 1]} : vector<3x256xf32> to vector<1x256xf32>
    %23 = vector.extract_strided_slice %1 {offsets = [1, 0], sizes = [1, 256], strides = [1, 1]} : vector<3x256xf32> to vector<1x256xf32>
    %24 = arith.mulf %22, %23 : vector<1x256xf32>
    %25 = arith.addf %21, %24 : vector<1x256xf32>
    %26 = vector.extract_strided_slice %1 {offsets = [2, 0], sizes = [1, 256], strides = [1, 1]} : vector<3x256xf32> to vector<1x256xf32>
    %27 = vector.extract_strided_slice %1 {offsets = [2, 0], sizes = [1, 256], strides = [1, 1]} : vector<3x256xf32> to vector<1x256xf32>
    %28 = arith.mulf %26, %27 : vector<1x256xf32>
    %29 = arith.addf %25, %28 : vector<1x256xf32>
    %30 = vector.extract_strided_slice %3 {offsets = [0, 0], sizes = [64, 1], strides = [1, 1]} : vector<64x3xf32> to vector<64x1xf32>
    %31 = vector.extract_strided_slice %1 {offsets = [0, 0], sizes = [1, 256], strides = [1, 1]} : vector<3x256xf32> to vector<1x256xf32>
    %32 = vector.broadcast %30 : vector<64x1xf32> to vector<64x256xf32>
    %33 = vector.broadcast %31 : vector<1x256xf32> to vector<64x256xf32>
    %34 = arith.mulf %32, %33 : vector<64x256xf32>
    %35 = vector.extract_strided_slice %3 {offsets = [0, 1], sizes = [64, 1], strides = [1, 1]} : vector<64x3xf32> to vector<64x1xf32>
    %36 = vector.extract_strided_slice %1 {offsets = [1, 0], sizes = [1, 256], strides = [1, 1]} : vector<3x256xf32> to vector<1x256xf32>
    %37 = vector.broadcast %35 : vector<64x1xf32> to vector<64x256xf32>
    %38 = vector.broadcast %36 : vector<1x256xf32> to vector<64x256xf32>
    %39 = arith.mulf %37, %38 : vector<64x256xf32>
    %40 = arith.addf %34, %39 : vector<64x256xf32>
    %41 = vector.extract_strided_slice %3 {offsets = [0, 2], sizes = [64, 1], strides = [1, 1]} : vector<64x3xf32> to vector<64x1xf32>
    %42 = vector.extract_strided_slice %1 {offsets = [2, 0], sizes = [1, 256], strides = [1, 1]} : vector<3x256xf32> to vector<1x256xf32>
    %43 = vector.broadcast %41 : vector<64x1xf32> to vector<64x256xf32>
    %44 = vector.broadcast %42 : vector<1x256xf32> to vector<64x256xf32>
    %45 = arith.mulf %43, %44 : vector<64x256xf32>
    %46 = arith.addf %40, %45 : vector<64x256xf32>
    %47 = vector.broadcast %18 : vector<64x1xf32> to vector<64x256xf32>
    %48 = vector.broadcast %29 : vector<1x256xf32> to vector<64x256xf32>
    %49 = arith.addf %47, %48 : vector<64x256xf32>
    %cst = arith.constant 2.000000e+00 : f32
    %50 = vector.broadcast %cst : f32 to vector<64x256xf32>
    %51 = arith.mulf %50, %46 : vector<64x256xf32>
    %52 = arith.subf %49, %51 : vector<64x256xf32>
    %cst_11 = arith.constant 0.000000e+00 : f32
    %53 = vector.broadcast %cst_11 : f32 to vector<64x256xf32>
    %54 = arith.maximumf %52, %53 : vector<64x256xf32>
    %55 = tpu.iota {dimensions = array<i32: 0>} : vector<64x256xi32>
    %56 = tpu.bitcast %54 : vector<64x256xf32> -> vector<64x256xi32>
    %c-64_i32 = arith.constant -64 : i32
    %57 = vector.broadcast %c-64_i32 : i32 to vector<64x256xi32>
    %58 = arith.andi %56, %57 : vector<64x256xi32>
    %59 = arith.ori %58, %55 : vector<64x256xi32>
    %cst_12 = arith.constant 0.000000e+00 : f32
    %60 = vector.broadcast %cst_12 : f32 to vector<64x256xf32>
    %cst_13 = arith.constant 0.000000e+00 : f32
    %61 = vector.broadcast %cst_13 : f32 to vector<1x256xf32>
    %cst_14 = arith.constant dense<2147483647> : vector<256xi32>
    %62 = vector.multi_reduction <minsi>, %59, %cst_14 [0] : vector<64x256xi32> to vector<256xi32>
    %63 = vector.shape_cast %62 : vector<256xi32> to vector<1x256xi32>
    %c63_i32 = arith.constant 63 : i32
    %64 = vector.broadcast %c63_i32 : i32 to vector<1x256xi32>
    %65 = arith.andi %63, %64 : vector<1x256xi32>
    %c-64_i32_15 = arith.constant -64 : i32
    %66 = vector.broadcast %c-64_i32_15 : i32 to vector<1x256xi32>
    %67 = arith.andi %63, %66 : vector<1x256xi32>
    %68 = tpu.bitcast %67 : vector<1x256xi32> -> vector<1x256xf32>
    %cst_16 = arith.constant 9.99999993E-9 : f32
    %69 = vector.broadcast %cst_16 : f32 to vector<1x256xf32>
    %70 = arith.addf %68, %69 : vector<1x256xf32>
    %cst_17 = arith.constant 1.000000e+00 : f32
    %71 = vector.broadcast %cst_17 : f32 to vector<1x256xf32>
    %72 = arith.divf %71, %70 : vector<1x256xf32>
    %73 = vector.broadcast %65 : vector<1x256xi32> to vector<64x256xi32>
    %74 = arith.cmpi eq, %55, %73 : vector<64x256xi32>
    %cst_18 = arith.constant 0.000000e+00 : f32
    %75 = vector.shape_cast %72 : vector<1x256xf32> to vector<1x256xf32>
    %76 = vector.broadcast %75 : vector<1x256xf32> to vector<64x256xf32>
    %77 = vector.broadcast %cst_18 : f32 to vector<64x256xf32>
    %78 = arith.select %74, %76, %77 : vector<64x256xi1>, vector<64x256xf32>
    %79 = arith.addf %60, %78 : vector<64x256xf32>
    %80 = arith.addf %61, %72 : vector<1x256xf32>
    %c2147483647_i32 = arith.constant 2147483647 : i32
    %81 = vector.broadcast %c2147483647_i32 : i32 to vector<64x256xi32>
    %82 = arith.select %74, %81, %59 : vector<64x256xi1>, vector<64x256xi32>
    %cst_19 = arith.constant dense<2147483647> : vector<256xi32>
    %83 = vector.multi_reduction <minsi>, %82, %cst_19 [0] : vector<64x256xi32> to vector<256xi32>
    %84 = vector.shape_cast %83 : vector<256xi32> to vector<1x256xi32>
    %c63_i32_20 = arith.constant 63 : i32
    %85 = vector.broadcast %c63_i32_20 : i32 to vector<1x256xi32>
    %86 = arith.andi %84, %85 : vector<1x256xi32>
    %c-64_i32_21 = arith.constant -64 : i32
    %87 = vector.broadcast %c-64_i32_21 : i32 to vector<1x256xi32>
    %88 = arith.andi %84, %87 : vector<1x256xi32>
    %89 = tpu.bitcast %88 : vector<1x256xi32> -> vector<1x256xf32>
    %cst_22 = arith.constant 9.99999993E-9 : f32
    %90 = vector.broadcast %cst_22 : f32 to vector<1x256xf32>
    %91 = arith.addf %89, %90 : vector<1x256xf32>
    %cst_23 = arith.constant 1.000000e+00 : f32
    %92 = vector.broadcast %cst_23 : f32 to vector<1x256xf32>
    %93 = arith.divf %92, %91 : vector<1x256xf32>
    %94 = vector.broadcast %86 : vector<1x256xi32> to vector<64x256xi32>
    %95 = arith.cmpi eq, %55, %94 : vector<64x256xi32>
    %cst_24 = arith.constant 0.000000e+00 : f32
    %96 = vector.shape_cast %93 : vector<1x256xf32> to vector<1x256xf32>
    %97 = vector.broadcast %96 : vector<1x256xf32> to vector<64x256xf32>
    %98 = vector.broadcast %cst_24 : f32 to vector<64x256xf32>
    %99 = arith.select %95, %97, %98 : vector<64x256xi1>, vector<64x256xf32>
    %100 = arith.addf %79, %99 : vector<64x256xf32>
    %101 = arith.addf %80, %93 : vector<1x256xf32>
    %c2147483647_i32_25 = arith.constant 2147483647 : i32
    %102 = vector.broadcast %c2147483647_i32_25 : i32 to vector<64x256xi32>
    %103 = arith.select %95, %102, %82 : vector<64x256xi1>, vector<64x256xi32>
    %cst_26 = arith.constant dense<2147483647> : vector<256xi32>
    %104 = vector.multi_reduction <minsi>, %103, %cst_26 [0] : vector<64x256xi32> to vector<256xi32>
    %105 = vector.shape_cast %104 : vector<256xi32> to vector<1x256xi32>
    %c63_i32_27 = arith.constant 63 : i32
    %106 = vector.broadcast %c63_i32_27 : i32 to vector<1x256xi32>
    %107 = arith.andi %105, %106 : vector<1x256xi32>
    %c-64_i32_28 = arith.constant -64 : i32
    %108 = vector.broadcast %c-64_i32_28 : i32 to vector<1x256xi32>
    %109 = arith.andi %105, %108 : vector<1x256xi32>
    %110 = tpu.bitcast %109 : vector<1x256xi32> -> vector<1x256xf32>
    %cst_29 = arith.constant 9.99999993E-9 : f32
    %111 = vector.broadcast %cst_29 : f32 to vector<1x256xf32>
    %112 = arith.addf %110, %111 : vector<1x256xf32>
    %cst_30 = arith.constant 1.000000e+00 : f32
    %113 = vector.broadcast %cst_30 : f32 to vector<1x256xf32>
    %114 = arith.divf %113, %112 : vector<1x256xf32>
    %115 = vector.broadcast %107 : vector<1x256xi32> to vector<64x256xi32>
    %116 = arith.cmpi eq, %55, %115 : vector<64x256xi32>
    %cst_31 = arith.constant 0.000000e+00 : f32
    %117 = vector.shape_cast %114 : vector<1x256xf32> to vector<1x256xf32>
    %118 = vector.broadcast %117 : vector<1x256xf32> to vector<64x256xf32>
    %119 = vector.broadcast %cst_31 : f32 to vector<64x256xf32>
    %120 = arith.select %116, %118, %119 : vector<64x256xi1>, vector<64x256xf32>
    %121 = arith.addf %100, %120 : vector<64x256xf32>
    %122 = arith.addf %101, %114 : vector<1x256xf32>
    %123 = tpu.reciprocal %122 {approx = true} : vector<1x256xf32> -> vector<1x256xf32>
    %124 = arith.truncf %121 : vector<64x256xf32> to vector<64x256xbf16>
    %cst_32 = arith.constant dense<0.000000e+00> : vector<32x256xf32>
    %125 = tpu.matmul %5, %124, %cst_32 {dimension_numbers = #tpu.dot_dimension_numbers<[1], [0], [0], [1], [0, 0, 1, 1], [], []>} : vector<32x64xbf16>, vector<64x256xbf16>, vector<32x256xf32> -> vector<32x256xf32>
    %126 = vector.broadcast %123 : vector<1x256xf32> to vector<32x256xf32>
    %127 = arith.mulf %125, %126 : vector<32x256xf32>
    %c0_33 = arith.constant 0 : index
    %c0_34 = arith.constant 0 : index
    %128 = vector.load %arg6[%c0_33, %c0_34] : memref<64x32xbf16, #tpu.memory_space<vmem>>, vector<64x32xbf16>
    %c0_35 = arith.constant 0 : index
    %c0_36 = arith.constant 0 : index
    %129 = vector.load %arg7[%c0_35, %c0_36] : memref<64x16xbf16, #tpu.memory_space<vmem>>, vector<64x16xbf16>
    %c0_37 = arith.constant 0 : index
    %c0_38 = arith.constant 0 : index
    %130 = vector.load %arg8[%c0_37, %c0_38] : memref<64x1xf32, #tpu.memory_space<vmem>>, vector<64x1xf32>
    %131 = arith.truncf %127 : vector<32x256xf32> to vector<32x256xbf16>
    %cst_39 = arith.constant dense<0.000000e+00> : vector<64x256xf32>
    %132 = tpu.matmul %128, %131, %cst_39 {dimension_numbers = #tpu.dot_dimension_numbers<[1], [0], [0], [1], [0, 0, 1, 1], [], []>} : vector<64x32xbf16>, vector<32x256xbf16>, vector<64x256xf32> -> vector<64x256xf32>
    %cst_40 = arith.constant dense<0.000000e+00> : vector<64x256xf32>
    %133 = tpu.matmul %129, %7, %cst_40 {dimension_numbers = #tpu.dot_dimension_numbers<[1], [0], [0], [1], [0, 0, 1, 1], [], []>} : vector<64x16xbf16>, vector<16x256xbf16>, vector<64x256xf32> -> vector<64x256xf32>
    %134 = arith.addf %132, %133 : vector<64x256xf32>
    %135 = vector.broadcast %130 : vector<64x1xf32> to vector<64x256xf32>
    %136 = arith.addf %134, %135 : vector<64x256xf32>
    %cst_41 = arith.constant 0.000000e+00 : f32
    %137 = vector.broadcast %cst_41 : f32 to vector<64x256xf32>
    %138 = arith.maximumf %136, %137 : vector<64x256xf32>
    %c0_42 = arith.constant 0 : index
    %c0_43 = arith.constant 0 : index
    %139 = vector.load %arg9[%c0_42, %c0_43] : memref<32x64xbf16, #tpu.memory_space<vmem>>, vector<32x64xbf16>
    %c0_44 = arith.constant 0 : index
    %c0_45 = arith.constant 0 : index
    %140 = vector.load %arg10[%c0_44, %c0_45] : memref<32x1xf32, #tpu.memory_space<vmem>>, vector<32x1xf32>
    %141 = arith.truncf %138 : vector<64x256xf32> to vector<64x256xbf16>
    %cst_46 = arith.constant dense<0.000000e+00> : vector<32x256xf32>
    %142 = tpu.matmul %139, %141, %cst_46 {dimension_numbers = #tpu.dot_dimension_numbers<[1], [0], [0], [1], [0, 0, 1, 1], [], []>} : vector<32x64xbf16>, vector<64x256xbf16>, vector<32x256xf32> -> vector<32x256xf32>
    %143 = vector.broadcast %140 : vector<32x1xf32> to vector<32x256xf32>
    %144 = arith.addf %142, %143 : vector<32x256xf32>
    %cst_47 = arith.constant 0.000000e+00 : f32
    %145 = vector.broadcast %cst_47 : f32 to vector<32x256xf32>
    %146 = arith.maximumf %144, %145 : vector<32x256xf32>
    %c0_48 = arith.constant 0 : index
    %c0_49 = arith.constant 0 : index
    %c0_50 = arith.constant 0 : index
    %147 = vector.load %arg11[%c0_48, %c0_49, %c0_50] : memref<1x32x256xf32, #tpu.memory_space<vmem>>, vector<1x32x256xf32>
    %148 = vector.shape_cast %147 : vector<1x32x256xf32> to vector<32x256xf32>
    %149 = vector.shape_cast %146 : vector<32x256xf32> to vector<1x32x256xf32>
    tpu.vector_store %arg11[%c0_48, %c0_49, %c0_50], %149 {strides = array<i32>} : memref<1x32x256xf32, #tpu.memory_space<vmem>>, vector<1x32x256xf32>,
    return
  }
  func.func @transform_0(%arg0: i32, %arg1: i32) -> (i32, i32, i32) {
    %c0_i32 = arith.constant 0 : i32
    %c0_i32_0 = arith.constant 0 : i32
    return %arg0, %c0_i32, %arg1 : i32, i32, i32
  }
  func.func @transform_1(%arg0: i32, %arg1: i32) -> (i32, i32, i32) {
    %c0_i32 = arith.constant 0 : i32
    %c0_i32_0 = arith.constant 0 : i32
    %c0_i32_1 = arith.constant 0 : i32
    return %arg0, %c0_i32, %c0_i32_0 : i32, i32, i32
  }
  func.func @transform_2(%arg0: i32, %arg1: i32) -> (i32, i32, i32) {
    %c0_i32 = arith.constant 0 : i32
    %c0_i32_0 = arith.constant 0 : i32
    %c0_i32_1 = arith.constant 0 : i32
    return %arg0, %c0_i32, %c0_i32_0 : i32, i32, i32
  }
  func.func @transform_3(%arg0: i32, %arg1: i32) -> (i32, i32, i32) {
    %c0_i32 = arith.constant 0 : i32
    %c0_i32_0 = arith.constant 0 : i32
    return %arg0, %c0_i32, %arg1 : i32, i32, i32
  }
  func.func @transform_4(%arg0: i32, %arg1: i32) -> (i32, i32) {
    %c0_i32 = arith.constant 0 : i32
    %c0_i32_0 = arith.constant 0 : i32
    %c0_i32_1 = arith.constant 0 : i32
    return %c0_i32, %c0_i32_0 : i32, i32
  }
  func.func @transform_5(%arg0: i32, %arg1: i32) -> (i32, i32) {
    %c0_i32 = arith.constant 0 : i32
    %c0_i32_0 = arith.constant 0 : i32
    %c0_i32_1 = arith.constant 0 : i32
    return %c0_i32, %c0_i32_0 : i32, i32
  }
  func.func @transform_6(%arg0: i32, %arg1: i32) -> (i32, i32) {
    %c0_i32 = arith.constant 0 : i32
    %c0_i32_0 = arith.constant 0 : i32
    %c0_i32_1 = arith.constant 0 : i32
    return %c0_i32, %c0_i32_0 : i32, i32
  }
  func.func @transform_7(%arg0: i32, %arg1: i32) -> (i32, i32) {
    %c0_i32 = arith.constant 0 : i32
    %c0_i32_0 = arith.constant 0 : i32
    %c0_i32_1 = arith.constant 0 : i32
    return %c0_i32, %c0_i32_0 : i32, i32
  }
  func.func @transform_8(%arg0: i32, %arg1: i32) -> (i32, i32) {
    %c0_i32 = arith.constant 0 : i32
    %c0_i32_0 = arith.constant 0 : i32
    %c0_i32_1 = arith.constant 0 : i32
    return %c0_i32, %c0_i32_0 : i32, i32
  }
  func.func @transform_9(%arg0: i32, %arg1: i32) -> (i32, i32, i32) {
    %c0_i32 = arith.constant 0 : i32
    %c0_i32_0 = arith.constant 0 : i32
    return %arg0, %c0_i32, %arg1 : i32, i32, i32
  }
}

</mosaic_0001>

<llo_original>
// kernel: tpu_custom_call.1
$region0: #{tpu_custom_call.1}
  #allocation0 [shape = 'u32[]', space=smem, size = 0x4, offset = 0x4, fixed_abs, tag = 'smem constant byte address 0x4 - core index']
  #allocation1 [shape = 'u32[144,128]{1,0:T(1,128)}', space=vmem, size = 0x12000, scoped, tag = 'internal scratch']
  %s0 = inlined_call_operand.vmem [shape: f32[2,3,256], index: 0, kind: input, shape index: {}]
  %s1 = inlined_call_operand.vmem [shape: f32[2,64,3], index: 1, kind: input, shape index: {}]
  %s2 = inlined_call_operand.vmem [shape: bf16[2,32,64], index: 2, kind: input, shape index: {}]
  %s3 = inlined_call_operand.vmem [shape: bf16[2,16,256], index: 3, kind: input, shape index: {}]
  %s4 = inlined_call_operand.vmem [shape: bf16[64,32], index: 4, kind: input, shape index: {}]
  %s5 = inlined_call_operand.vmem [shape: bf16[64,16], index: 5, kind: input, shape index: {}]
  %s6 = inlined_call_operand.vmem [shape: f32[64,1], index: 6, kind: input, shape index: {}]
  %s7 = inlined_call_operand.vmem [shape: bf16[32,64], index: 7, kind: input, shape index: {}]
  %s8 = inlined_call_operand.vmem [shape: f32[32,1], index: 8, kind: input, shape index: {}]
  %s9 = inlined_call_operand.hbm [shape: f32[2,32,256], index: 9, kind: output, shape index: {}]
  %s10 = sld [smem:[#allocation0]]
  $region69: #{tpu_custom_call.1} parent=0
    _
  %s12 = ssub.s32 1, %s10
  %s13 = scalar_select 0, %s12, %s10
  $region1: #{tpu_custom_call.1} parent=0
    #allocation2 [shape = 'u8[65536]{0}', space=vmem, size = 0x10000, scoped, tag = 'output window, operand 0']
    #allocation3 [shape = 's32[2]{0}', space=sflag, size = 0x8, scoped, tag = 'scoped memory for tpu_custom_call.1']
    %14 = vsyncpa [#allocation3], 0
    %s15 = scalar_lea.sflag [#allocation3], 1
    %16 = vsyncpa %s15, 0
    loop: start=0, step=1, limit=4
    $region2: #{tpu_custom_call.1} parent=1 // loop_pre_header
      _
    $region3: #{tpu_custom_call.1} parent=1 // loop_header
      %s18 = sphi 0, %s22
      %p19 = scmp.ge.s32.totalorder %s18, 4
      %s25 = sphi 0, %s37
      %s26 = sphi 0, %s33
      %s27 = sphi 0, %s25
      %s28 = sphi 0, %s26
      %s29 = sphi 0, %s27
      %s30 = sphi 0, %s28
      %s42 = sphi 0, %s44
      %s45 = sphi 0, %s42
      %s46 = sphi 0, %s45
      %s62 = sphi 0, %s46
      %s68 = sphi 0, %s70
      %s71 = sphi 0, %s68
      %s72 = sphi 0, %s71
      %s88 = sphi 0, %s72
      %s94 = sphi 0, %s96
      %s97 = sphi 0, %s94
      %s98 = sphi 0, %s97
      %s114 = sphi 0, %s98
      %s122 = sphi 0, %s124
      %s125 = sphi 0, %s122
      %s126 = sphi 0, %s125
      %s142 = sphi 0, %s126
      %s146 = sphi 0, %s146
      %s148 = sphi 0, %s146
      %s149 = sphi 0, %s148
      %s163 = sphi 0, %s149
      %s167 = sphi 0, %s167
      %s169 = sphi 0, %s167
      %s170 = sphi 0, %s169
      %s184 = sphi 0, %s170
      %s188 = sphi 0, %s188
      %s190 = sphi 0, %s188
      %s191 = sphi 0, %s190
      %s205 = sphi 0, %s191
      %s209 = sphi 0, %s209
      %s211 = sphi 0, %s209
      %s212 = sphi 0, %s211
      %s226 = sphi 0, %s212
      %s230 = sphi 0, %s230
      %s232 = sphi 0, %s230
      %s233 = sphi 0, %s232
      %s247 = sphi 0, %s233
      %s255 = sphi 0, %s257
      %s258 = sphi 0, %s255
      %s259 = sphi 0, %s258
      %s275 = sphi 0, %s259
    $region4: #{tpu_custom_call.1} parent=1 // loop_header_branch
      %21 = sbr.rel (%p19) target = $region8
    $region5: #{tpu_custom_call.1} parent=1 // loop_body
      %s23 = ssub.s32 %s18, 1
      %s24 = ssub.s32 %s18, 2
      %s31 = sadd.s32 1, %s26
      %p32 = scmp.ge.s32.totalorder %s31, 1
      %s33 = scalar_select %p32, 0, %s31
      %s34 = sadd.s32 1, %s25
      %s35 = scalar_select %p32, %s34, %s25
      %p36 = scmp.ge.s32.totalorder %s35, 2
      %s37 = scalar_select %p36, 0, %s35
      %s38 = ssub.s32 %s25, %s37
      %s39 = ssub.s32 %s26, %s33
      %s40 = sor.u32 %s38, %s39
      %p41 = scmp.eq.s32.totalorder %s40, 0
      %s43 = sadd.s32 %s42, 1
      %s44 = scalar_select %p41, %s42, %s43
      %p47 = pneg %p41
      %p48 = scmp.eq.s32.totalorder %s18, 1
      %p49 = por %p47, %p48
      %p50 = scmp.ne.s32.totalorder %s42, %s45
      %p51 = scmp.eq.s32.totalorder %s18, 0
      %p52 = por %p50, %p51
      %p53 = scmp.ne.s32.totalorder %s42, %s45
      %p54 = scmp.eq.s32.totalorder %s23, 1
      %p55 = por %p53, %p54
      %p56 = scmp.ne.s32.totalorder %s45, %s46
      %p57 = scmp.eq.s32.totalorder %s23, 0
      %p58 = por %p56, %p57
      %p59 = scmp.ne.s32.totalorder %s45, %s46
      %p60 = scmp.eq.s32.totalorder %s24, 1
      %p61 = por %p59, %p60
      %p63 = scmp.ne.s32.totalorder %s46, %s62
      %p64 = scmp.eq.s32.totalorder %s24, 0
      %p65 = por %p63, %p64
      %s66 = ssub.s32 %s25, %s37
      %p67 = scmp.eq.s32.totalorder %s66, 0
      %s69 = sadd.s32 %s68, 1
      %s70 = scalar_select %p67, %s68, %s69
      %p73 = pneg %p67
      %p74 = scmp.eq.s32.totalorder %s18, 1
      %p75 = por %p73, %p74
      %p76 = scmp.ne.s32.totalorder %s68, %s71
      %p77 = scmp.eq.s32.totalorder %s18, 0
      %p78 = por %p76, %p77
      %p79 = scmp.ne.s32.totalorder %s68, %s71
      %p80 = scmp.eq.s32.totalorder %s23, 1
      %p81 = por %p79, %p80
      %p82 = scmp.ne.s32.totalorder %s71, %s72
      %p83 = scmp.eq.s32.totalorder %s23, 0
      %p84 = por %p82, %p83
      %p85 = scmp.ne.s32.totalorder %s71, %s72
      %p86 = scmp.eq.s32.totalorder %s24, 1
      %p87 = por %p85, %p86
      %p89 = scmp.ne.s32.totalorder %s72, %s88
      %p90 = scmp.eq.s32.totalorder %s24, 0
      %p91 = por %p89, %p90
      %s92 = ssub.s32 %s25, %s37
      %p93 = scmp.eq.s32.totalorder %s92, 0
      %s95 = sadd.s32 %s94, 1
      %s96 = scalar_select %p93, %s94, %s95
      %p99 = pneg %p93
      %p100 = scmp.eq.s32.totalorder %s18, 1
      %p101 = por %p99, %p100
      %p102 = scmp.ne.s32.totalorder %s94, %s97
      %p103 = scmp.eq.s32.totalorder %s18, 0
      %p104 = por %p102, %p103
      %p105 = scmp.ne.s32.totalorder %s94, %s97
      %p106 = scmp.eq.s32.totalorder %s23, 1
      %p107 = por %p105, %p106
      %p108 = scmp.ne.s32.totalorder %s97, %s98
      %p109 = scmp.eq.s32.totalorder %s23, 0
      %p110 = por %p108, %p109
      %p111 = scmp.ne.s32.totalorder %s97, %s98
      %p112 = scmp.eq.s32.totalorder %s24, 1
      %p113 = por %p111, %p112
      %p115 = scmp.ne.s32.totalorder %s98, %s114
      %p116 = scmp.eq.s32.totalorder %s24, 0
      %p117 = por %p115, %p116
      %s118 = ssub.s32 %s25, %s37
      %s119 = ssub.s32 %s26, %s33
      %s120 = sor.u32 %s118, %s119
      %p121 = scmp.eq.s32.totalorder %s120, 0
      %s123 = sadd.s32 %s122, 1
      %s124 = scalar_select %p121, %s122, %s123
      %p127 = pneg %p121
      %p128 = scmp.eq.s32.totalorder %s18, 1
      %p129 = por %p127, %p128
      %p130 = scmp.ne.s32.totalorder %s122, %s125
      %p131 = scmp.eq.s32.totalorder %s18, 0
      %p132 = por %p130, %p131
      %p133 = scmp.ne.s32.totalorder %s122, %s125
      %p134 = scmp.eq.s32.totalorder %s23, 1
      %p135 = por %p133, %p134
      %p136 = scmp.ne.s32.totalorder %s125, %s126
      %p137 = scmp.eq.s32.totalorder %s23, 0
      %p138 = por %p136, %p137
      %p139 = scmp.ne.s32.totalorder %s125, %s126
      %p140 = scmp.eq.s32.totalorder %s24, 1
      %p141 = por %p139, %p140
      %p143 = scmp.ne.s32.totalorder %s126, %s142
      %p144 = scmp.eq.s32.totalorder %s24, 0
      %p145 = por %p143, %p144
      %s147 = sadd.s32 %s146, 1
      %p150 = scmp.eq.s32.totalorder %s18, 1
      %p151 = scmp.ne.s32.totalorder %s146, %s148
      %p152 = scmp.eq.s32.totalorder %s18, 0
      %p153 = por %p151, %p152
      %p154 = scmp.ne.s32.totalorder %s146, %s148
      %p155 = scmp.eq.s32.totalorder %s23, 1
      %p156 = por %p154, %p155
      %p157 = scmp.ne.s32.totalorder %s148, %s149
      %p158 = scmp.eq.s32.totalorder %s23, 0
      %p159 = por %p157, %p158
      %p160 = scmp.ne.s32.totalorder %s148, %s149
      %p161 = scmp.eq.s32.totalorder %s24, 1
      %p162 = por %p160, %p161
      %p164 = scmp.ne.s32.totalorder %s149, %s163
      %p165 = scmp.eq.s32.totalorder %s24, 0
      %p166 = por %p164, %p165
      %s168 = sadd.s32 %s167, 1
      %p171 = scmp.eq.s32.totalorder %s18, 1
      %p172 = scmp.ne.s32.totalorder %s167, %s169
      %p173 = scmp.eq.s32.totalorder %s18, 0
      %p174 = por %p172, %p173
      %p175 = scmp.ne.s32.totalorder %s167, %s169
      %p176 = scmp.eq.s32.totalorder %s23, 1
      %p177 = por %p175, %p176
      %p178 = scmp.ne.s32.totalorder %s169, %s170
      %p179 = scmp.eq.s32.totalorder %s23, 0
      %p180 = por %p178, %p179
      %p181 = scmp.ne.s32.totalorder %s169, %s170
      %p182 = scmp.eq.s32.totalorder %s24, 1
      %p183 = por %p181, %p182
      %p185 = scmp.ne.s32.totalorder %s170, %s184
      %p186 = scmp.eq.s32.totalorder %s24, 0
      %p187 = por %p185, %p186
      %s189 = sadd.s32 %s188, 1
      %p192 = scmp.eq.s32.totalorder %s18, 1
      %p193 = scmp.ne.s32.totalorder %s188, %s190
      %p194 = scmp.eq.s32.totalorder %s18, 0
      %p195 = por %p193, %p194
      %p196 = scmp.ne.s32.totalorder %s188, %s190
      %p197 = scmp.eq.s32.totalorder %s23, 1
      %p198 = por %p196, %p197
      %p199 = scmp.ne.s32.totalorder %s190, %s191
      %p200 = scmp.eq.s32.totalorder %s23, 0
      %p201 = por %p199, %p200
      %p202 = scmp.ne.s32.totalorder %s190, %s191
      %p203 = scmp.eq.s32.totalorder %s24, 1
      %p204 = por %p202, %p203
      %p206 = scmp.ne.s32.totalorder %s191, %s205
      %p207 = scmp.eq.s32.totalorder %s24, 0
      %p208 = por %p206, %p207
      %s210 = sadd.s32 %s209, 1
      %p213 = scmp.eq.s32.totalorder %s18, 1
      %p214 = scmp.ne.s32.totalorder %s209, %s211
      %p215 = scmp.eq.s32.totalorder %s18, 0
      %p216 = por %p214, %p215
      %p217 = scmp.ne.s32.totalorder %s209, %s211
      %p218 = scmp.eq.s32.totalorder %s23, 1
      %p219 = por %p217, %p218
      %p220 = scmp.ne.s32.totalorder %s211, %s212
      %p221 = scmp.eq.s32.totalorder %s23, 0
      %p222 = por %p220, %p221
      %p223 = scmp.ne.s32.totalorder %s211, %s212
      %p224 = scmp.eq.s32.totalorder %s24, 1
      %p225 = por %p223, %p224
      %p227 = scmp.ne.s32.totalorder %s212, %s226
      %p228 = scmp.eq.s32.totalorder %s24, 0
      %p229 = por %p227, %p228
      %s231 = sadd.s32 %s230, 1
      %p234 = scmp.eq.s32.totalorder %s18, 1
      %p235 = scmp.ne.s32.totalorder %s230, %s232
      %p236 = scmp.eq.s32.totalorder %s18, 0
      %p237 = por %p235, %p236
      %p238 = scmp.ne.s32.totalorder %s230, %s232
      %p239 = scmp.eq.s32.totalorder %s23, 1
      %p240 = por %p238, %p239
      %p241 = scmp.ne.s32.totalorder %s232, %s233
      %p242 = scmp.eq.s32.totalorder %s23, 0
      %p243 = por %p241, %p242
      %p244 = scmp.ne.s32.totalorder %s232, %s233
      %p245 = scmp.eq.s32.totalorder %s24, 1
      %p246 = por %p244, %p245
      %p248 = scmp.ne.s32.totalorder %s233, %s247
      %p249 = scmp.eq.s32.totalorder %s24, 0
      %p250 = por %p248, %p249
      %s251 = ssub.s32 %s25, %s37
      %s252 = ssub.s32 %s26, %s33
      %s253 = sor.u32 %s251, %s252
      %p254 = scmp.eq.s32.totalorder %s253, 0
      %s256 = sadd.s32 %s255, 1
      %s257 = scalar_select %p254, %s255, %s256
      %p260 = pneg %p254
      %p261 = scmp.eq.s32.totalorder %s18, 1
      %p262 = por %p260, %p261
      %p263 = scmp.ne.s32.totalorder %s255, %s258
      %p264 = scmp.eq.s32.totalorder %s18, 0
      %p265 = por %p263, %p264
      %p266 = scmp.ne.s32.totalorder %s255, %s258
      %p267 = scmp.eq.s32.totalorder %s23, 1
      %p268 = por %p266, %p267
      %p269 = scmp.ne.s32.totalorder %s258, %s259
      %p270 = scmp.eq.s32.totalorder %s23, 0
      %p271 = por %p269, %p270
      %p272 = scmp.ne.s32.totalorder %s258, %s259
      %p273 = scmp.eq.s32.totalorder %s24, 1
      %p274 = por %p272, %p273
      %p276 = scmp.ne.s32.totalorder %s259, %s275
      %p277 = scmp.eq.s32.totalorder %s24, 0
      %p278 = por %p276, %p277
      %p279 = scmp.le.s32.totalorder 1, %s18
      %p280 = scmp.lt.s32.totalorder %s18, 3
      %p281 = pnand %p279, %p280
      %p282 = pneg %p281
      // Predicated region
      $region9: #{tpu_custom_call.1} parent=5 // pred_check
        _
      $region10: #{tpu_custom_call.1} parent=5 // pred_check_branch
        %284 = sbr.rel (%p281) target = $region12
      $region11: #{tpu_custom_call.1} parent=5 // pred_region
        %s285 = ssub.s32 %s18, 1
        // Predicated region
        $region13: #{tpu_custom_call.1} parent=11 // pred_check
          %p286 = pneg %p159
        $region14: #{tpu_custom_call.1} parent=11 // pred_check_branch
          %288 = sbr.rel (%p286) target = $region16
        $region15: #{tpu_custom_call.1} parent=11 // pred_region
          _
        $region16: #{tpu_custom_call.1} parent=11 // pred_fallthru
          _
        // Predicated region
        $region17: #{tpu_custom_call.1} parent=11 // pred_check
          %p289 = pneg %p180
        $region18: #{tpu_custom_call.1} parent=11 // pred_check_branch
          %291 = sbr.rel (%p289) target = $region20
        $region19: #{tpu_custom_call.1} parent=11 // pred_region
          _
        $region20: #{tpu_custom_call.1} parent=11 // pred_fallthru
          _
        // Predicated region
        $region21: #{tpu_custom_call.1} parent=11 // pred_check
          %p292 = pneg %p201
        $region22: #{tpu_custom_call.1} parent=11 // pred_check_branch
          %294 = sbr.rel (%p292) target = $region24
        $region23: #{tpu_custom_call.1} parent=11 // pred_region
          _
        $region24: #{tpu_custom_call.1} parent=11 // pred_fallthru
          _
        // Predicated region
        $region25: #{tpu_custom_call.1} parent=11 // pred_check
          %p295 = pneg %p222
        $region26: #{tpu_custom_call.1} parent=11 // pred_check_branch
          %297 = sbr.rel (%p295) target = $region28
        $region27: #{tpu_custom_call.1} parent=11 // pred_region
          _
        $region28: #{tpu_custom_call.1} parent=11 // pred_fallthru
          _
        // Predicated region
        $region29: #{tpu_custom_call.1} parent=11 // pred_check
          %p298 = pneg %p243
        $region30: #{tpu_custom_call.1} parent=11 // pred_check_branch
          %300 = sbr.rel (%p298) target = $region32
        $region31: #{tpu_custom_call.1} parent=11 // pred_region
          _
        $region32: #{tpu_custom_call.1} parent=11 // pred_fallthru
          _
      $region12: #{tpu_custom_call.1} parent=5 // pred_fallthru
        _
      %p301 = scmp.lt.s32.totalorder %s18, 2
      // Predicated region
      $region33: #{tpu_custom_call.1} parent=5 // pred_check
        %p302 = pneg %p301
      $region34: #{tpu_custom_call.1} parent=5 // pred_check_branch
        %304 = sbr.rel (%p302) target = $region36
      $region35: #{tpu_custom_call.1} parent=5 // pred_region
        // Predicated region
        $region37: #{tpu_custom_call.1} parent=35 // pred_check
          %p305 = pneg %p52
        $region38: #{tpu_custom_call.1} parent=35 // pred_check_branch
          %307 = sbr.rel (%p305) target = $region40
        $region39: #{tpu_custom_call.1} parent=35 // pred_region
          %s308 = smul.u32 2, %s26
          %p309 = scmp.lt.s32.totalorder %s25, 1
          %s310 = scalar_select %p309, %s25, 1
          %p311 = scmp.lt.s32.totalorder %s308, 1
          %s312 = scalar_select %p311, %s308, 1
          %s313 = smul.addr %s310, 2
          %s314 = sadd.s32 %s312, %s313
          %s315 = smul.addr %s314, 4
          %s316 = scalar_lea.vmem %s0, %s315
          %s317 = smul.u32 2, %s26
        $region40: #{tpu_custom_call.1} parent=35 // pred_fallthru
          _
        // Predicated region
        $region41: #{tpu_custom_call.1} parent=35 // pred_check
          %p318 = pneg %p78
        $region42: #{tpu_custom_call.1} parent=35 // pred_check_branch
          %320 = sbr.rel (%p318) target = $region44
        $region43: #{tpu_custom_call.1} parent=35 // pred_region
          %p321 = scmp.lt.s32.totalorder %s25, 1
          %s322 = scalar_select %p321, %s25, 1
          %s323 = smul.addr %s322, 8
          %s324 = smul.addr %s323, 8
          %s325 = scalar_lea.vmem %s1, %s324
        $region44: #{tpu_custom_call.1} parent=35 // pred_fallthru
          _
        // Predicated region
        $region45: #{tpu_custom_call.1} parent=35 // pred_check
          %p326 = pneg %p104
        $region46: #{tpu_custom_call.1} parent=35 // pred_check_branch
          %328 = sbr.rel (%p326) target = $region48
        $region47: #{tpu_custom_call.1} parent=35 // pred_region
          %p329 = scmp.lt.s32.totalorder %s25, 1
          %s330 = scalar_select %p329, %s25, 1
          %s331 = smul.addr %s330, 4
          %s332 = smul.addr %s331, 4
          %s333 = scalar_lea.vmem %s2, %s332
        $region48: #{tpu_custom_call.1} parent=35 // pred_fallthru
          _
        // Predicated region
        $region49: #{tpu_custom_call.1} parent=35 // pred_check
          %p334 = pneg %p132
        $region50: #{tpu_custom_call.1} parent=35 // pred_check_branch
          %336 = sbr.rel (%p334) target = $region52
        $region51: #{tpu_custom_call.1} parent=35 // pred_region
          %s337 = smul.u32 2, %s26
          %p338 = scmp.lt.s32.totalorder %s25, 1
          %s339 = scalar_select %p338, %s25, 1
          %p340 = scmp.lt.s32.totalorder %s337, 1
          %s341 = scalar_select %p340, %s337, 1
          %s342 = smul.addr %s339, 4
          %s343 = sadd.s32 %s341, %s342
          %s344 = smul.addr %s343, 4
          %s345 = scalar_lea.vmem %s3, %s344
          %s346 = smul.u32 2, %s26
        $region52: #{tpu_custom_call.1} parent=35 // pred_fallthru
          _
      $region36: #{tpu_custom_call.1} parent=5 // pred_fallthru
        _
      %p347 = scmp.le.s32.totalorder 1, %s18
      %p348 = scmp.lt.s32.totalorder %s18, 3
      %p349 = pnand %p347, %p348
      %p350 = pneg %p349
      // Predicated region
      $region53: #{tpu_custom_call.1} parent=5 // pred_check
        _
      $region54: #{tpu_custom_call.1} parent=5 // pred_check_branch
        %352 = sbr.rel (%p349) target = $region56
      $region55: #{tpu_custom_call.1} parent=5 // pred_region
        %s353 = ssub.s32 %s18, 1
        %s354 = smul.u32 2, %s28
        %p355 = scmp.lt.s32.totalorder %s27, 1
        %s356 = scalar_select %p355, %s27, 1
        %p357 = scmp.lt.s32.totalorder %s354, 1
        %s358 = scalar_select %p357, %s354, 1
        %s359 = smul.addr %s356, 2
        %s360 = sadd.s32 %s358, %s359
        %s361 = smul.addr %s360, 4
        %s362 = scalar_lea.vmem %s0, %s361
        %p363 = pneg %p58
        %p364 = pneg %p55
        %p365 = scmp.lt.s32.totalorder %s27, 1
        %s366 = scalar_select %p365, %s27, 1
        %s367 = smul.addr %s366, 8
        %s368 = smul.addr %s367, 8
        %s369 = scalar_lea.vmem %s1, %s368
        %p370 = pneg %p84
        %p371 = pneg %p81
        %p372 = scmp.lt.s32.totalorder %s27, 1
        %s373 = scalar_select %p372, %s27, 1
        %s374 = smul.addr %s373, 4
        %s375 = smul.addr %s374, 4
        %s376 = scalar_lea.vmem %s2, %s375
        %p377 = pneg %p110
        %p378 = pneg %p107
        %s379 = smul.u32 2, %s28
        %p380 = scmp.lt.s32.totalorder %s27, 1
        %s381 = scalar_select %p380, %s27, 1
        %p382 = scmp.lt.s32.totalorder %s379, 1
        %s383 = scalar_select %p382, %s379, 1
        %s384 = smul.addr %s381, 4
        %s385 = sadd.s32 %s383, %s384
        %s386 = smul.addr %s385, 4
        %s387 = scalar_lea.vmem %s3, %s386
        %p388 = pneg %p138
        %p389 = pneg %p135
        %p390 = pneg %p159
        %p391 = pneg %p156
        %p392 = pneg %p180
        %p393 = pneg %p177
        %p394 = pneg %p201
        %p395 = pneg %p198
        %p396 = pneg %p222
        %p397 = pneg %p219
        %p398 = pneg %p243
        %p399 = pneg %p240
        %p400 = pneg %p271
        %p401 = pneg %p268
        %s402 = sand.u32 %s258, 1
        %s403 = scalar_lea.sflag [#allocation3], %s402
        %s404 = sand.u32 %s258, 1
        %s405 = smul.addr %s404, 64
        %s406 = scalar_lea.vmem [#allocation2], %s405
        %s407 = smul.u32 2, %s28
        %p408 = scmp.lt.s32.totalorder %s27, 1
        %s409 = scalar_select %p408, %s27, 1
        %p410 = scmp.lt.s32.totalorder %s407, 1
        %s411 = scalar_select %p410, %s407, 1
        %s412 = smul.addr %s409, 2
        %s413 = sadd.s32 %s411, %s412
        %s414 = smul.addr %s413, 4
        %s415 = scalar_lea.vmem %s0, %s414
        %s416 = smul.u32 2, %s28
        %p417 = scmp.lt.s32.totalorder %s27, 1
        %s418 = scalar_select %p417, %s27, 1
        %s419 = smul.addr %s418, 8
        %s420 = smul.addr %s419, 8
        %s421 = scalar_lea.vmem %s1, %s420
        %p422 = scmp.lt.s32.totalorder %s27, 1
        %s423 = scalar_select %p422, %s27, 1
        %s424 = smul.addr %s423, 4
        %s425 = smul.addr %s424, 4
        %s426 = scalar_lea.vmem %s2, %s425
        %s427 = smul.u32 2, %s28
        %p428 = scmp.lt.s32.totalorder %s27, 1
        %s429 = scalar_select %p428, %s27, 1
        %p430 = scmp.lt.s32.totalorder %s427, 1
        %s431 = scalar_select %p430, %s427, 1
        %s432 = smul.addr %s429, 4
        %s433 = sadd.s32 %s431, %s432
        %s434 = smul.addr %s433, 4
        %s435 = scalar_lea.vmem %s3, %s434
        %s436 = smul.u32 2, %s28
        %s437 = smul.u32 2, %s28
        %v439 = vld [vmem:[%s415] sm:$0x77]
        %v440 = vld [vmem:[%s421] sm:$0xff]
        %v441 = vld [vmem:[%s421 + $0x8] sm:$0xff]
        %v442 = vld [vmem:[%s421 + $0x10] sm:$0xff]
        %v443 = vld [vmem:[%s421 + $0x18] sm:$0xff]
        %v444 = vld [vmem:[%s421 + $0x20] sm:$0xff]
        %v445 = vld [vmem:[%s421 + $0x28] sm:$0xff]
        %v446 = vld [vmem:[%s421 + $0x30] sm:$0xff]
        %v447 = vld [vmem:[%s421 + $0x38] sm:$0xff]
        %v448 = vld [vmem:[%s426] sm:$0xf]
        %v449 = vld [vmem:[%s426 + $0x4] sm:$0xf]
        %v450 = vld [vmem:[%s426 + $0x8] sm:$0xf]
        %v451 = vld [vmem:[%s426 + $0xc] sm:$0xf]
        %v452 = vld [vmem:[%s435] sm:$0xff]
        %v453 = vld [vmem:[%s435 + $0x8] sm:$0xff]
        %v454 = vmul.f32 %v440, %v440
        %v455 = vmul.f32 %v441, %v441
        %v456 = vmul.f32 %v442, %v442
        %v457 = vmul.f32 %v443, %v443
        %v458 = vmul.f32 %v444, %v444
        %v459 = vmul.f32 %v445, %v445
        %v460 = vmul.f32 %v446, %v446
        %v461 = vmul.f32 %v447, %v447
        %470 = vrot.lane.b32.xlu0 %v454, 127
        %v471 = vpop.permute.xlu0 %470
        %472 = vrot.lane.b32.xlu0 %v455, 127
        %v473 = vpop.permute.xlu0 %472
        %474 = vrot.lane.b32.xlu0 %v456, 127
        %v475 = vpop.permute.xlu0 %474
        %476 = vrot.lane.b32.xlu0 %v457, 127
        %v477 = vpop.permute.xlu0 %476
        %478 = vrot.lane.b32.xlu0 %v458, 127
        %v479 = vpop.permute.xlu0 %478
        %480 = vrot.lane.b32.xlu0 %v459, 127
        %v481 = vpop.permute.xlu0 %480
        %482 = vrot.lane.b32.xlu0 %v460, 127
        %v483 = vpop.permute.xlu0 %482
        %484 = vrot.lane.b32.xlu0 %v461, 127
        %v485 = vpop.permute.xlu0 %484
        %v494 = vadd.f32 %v454, %v471
        %v495 = vadd.f32 %v455, %v473
        %v496 = vadd.f32 %v456, %v475
        %v497 = vadd.f32 %v457, %v477
        %v498 = vadd.f32 %v458, %v479
        %v499 = vadd.f32 %v459, %v481
        %v500 = vadd.f32 %v460, %v483
        %v501 = vadd.f32 %v461, %v485
        %502 = vrot.lane.b32.xlu0 %v454, 126
        %v503 = vpop.permute.xlu0 %502
        %504 = vrot.lane.b32.xlu0 %v455, 126
        %v505 = vpop.permute.xlu0 %504
        %506 = vrot.lane.b32.xlu0 %v456, 126
        %v507 = vpop.permute.xlu0 %506
        %508 = vrot.lane.b32.xlu0 %v457, 126
        %v509 = vpop.permute.xlu0 %508
        %510 = vrot.lane.b32.xlu0 %v458, 126
        %v511 = vpop.permute.xlu0 %510
        %512 = vrot.lane.b32.xlu0 %v459, 126
        %v513 = vpop.permute.xlu0 %512
        %514 = vrot.lane.b32.xlu0 %v460, 126
        %v515 = vpop.permute.xlu0 %514
        %516 = vrot.lane.b32.xlu0 %v461, 126
        %v517 = vpop.permute.xlu0 %516
        %v526 = vadd.f32 %v494, %v503
        %v527 = vadd.f32 %v495, %v505
        %v528 = vadd.f32 %v496, %v507
        %v529 = vadd.f32 %v497, %v509
        %v530 = vadd.f32 %v498, %v511
        %v531 = vadd.f32 %v499, %v513
        %v532 = vadd.f32 %v500, %v515
        %v533 = vadd.f32 %v501, %v517
        %v534 = vmul.f32 %v439, %v439
        %v536 = vrot.slane %v534, 5
        %v537 = vrot.slane %v536, 4
        %v539 = vadd.f32 %v534, %v537
        %v540 = vrot.slane %v534, 6
        %v541 = vrot.slane %v540, 4
        %v543 = vadd.f32 %v539, %v541
        %545 = vset.pattern.permute.xlu0 0
        %546 = vperm.xlu0 %545, %v440
        %v547 = vpop.permute.xlu0 %546
        %550 = vset.pattern.permute.xlu0 0
        %551 = vperm.xlu0 %550, %v441
        %v552 = vpop.permute.xlu0 %551
        %555 = vset.pattern.permute.xlu0 0
        %556 = vperm.xlu0 %555, %v442
        %v557 = vpop.permute.xlu0 %556
        %560 = vset.pattern.permute.xlu0 0
        %561 = vperm.xlu0 %560, %v443
        %v562 = vpop.permute.xlu0 %561
        %565 = vset.pattern.permute.xlu0 0
        %566 = vperm.xlu0 %565, %v444
        %v567 = vpop.permute.xlu0 %566
        %570 = vset.pattern.permute.xlu0 0
        %571 = vperm.xlu0 %570, %v445
        %v572 = vpop.permute.xlu0 %571
        %575 = vset.pattern.permute.xlu0 0
        %576 = vperm.xlu0 %575, %v446
        %v577 = vpop.permute.xlu0 %576
        %580 = vset.pattern.permute.xlu0 0
        %581 = vperm.xlu0 %580, %v447
        %v582 = vpop.permute.xlu0 %581
        %v585 = vlaneseq
        %v586 = vshrl.u32 %v585, 7
        %v587 = vsub.s32 0, %v586
        %v588 = vrot.slane %v439, %v587
        %v589 = vlaneseq
        %v590 = vshrl.u32 %v589, 7
        %v591 = vsub.s32 4, %v590
        %v592 = vrot.slane %v439, %v591
        %v595 = vlaneseq
        %v596 = vshrl.u32 %v595, 7
        %v597 = vsub.s32 0, %v596
        %v598 = vrot.slane %v588, %v597
        %v599 = vlaneseq
        %v600 = vshrl.u32 %v599, 7
        %v601 = vsub.s32 0, %v600
        %v602 = vrot.slane %v592, %v601
        %v603 = vmul.f32 %v547, %v598
        %v604 = vmul.f32 %v547, %v602
        %v605 = vmul.f32 %v552, %v598
        %v606 = vmul.f32 %v552, %v602
        %v607 = vmul.f32 %v557, %v598
        %v608 = vmul.f32 %v557, %v602
        %v609 = vmul.f32 %v562, %v598
        %v610 = vmul.f32 %v562, %v602
        %v611 = vmul.f32 %v567, %v598
        %v612 = vmul.f32 %v567, %v602
        %v613 = vmul.f32 %v572, %v598
        %v614 = vmul.f32 %v572, %v602
        %v615 = vmul.f32 %v577, %v598
        %v616 = vmul.f32 %v577, %v602
        %v617 = vmul.f32 %v582, %v598
        %v618 = vmul.f32 %v582, %v602
        %619 = vset.pattern.permute.xlu0 1
        %620 = vperm.xlu0 %619, %v440
        %v621 = vpop.permute.xlu0 %620
        %623 = vset.pattern.permute.xlu0 1
        %624 = vperm.xlu0 %623, %v441
        %v625 = vpop.permute.xlu0 %624
        %627 = vset.pattern.permute.xlu0 1
        %628 = vperm.xlu0 %627, %v442
        %v629 = vpop.permute.xlu0 %628
        %631 = vset.pattern.permute.xlu0 1
        %632 = vperm.xlu0 %631, %v443
        %v633 = vpop.permute.xlu0 %632
        %635 = vset.pattern.permute.xlu0 1
        %636 = vperm.xlu0 %635, %v444
        %v637 = vpop.permute.xlu0 %636
        %639 = vset.pattern.permute.xlu0 1
        %640 = vperm.xlu0 %639, %v445
        %v641 = vpop.permute.xlu0 %640
        %643 = vset.pattern.permute.xlu0 1
        %644 = vperm.xlu0 %643, %v446
        %v645 = vpop.permute.xlu0 %644
        %647 = vset.pattern.permute.xlu0 1
        %648 = vperm.xlu0 %647, %v447
        %v649 = vpop.permute.xlu0 %648
        %v651 = vlaneseq
        %v652 = vshrl.u32 %v651, 7
        %v653 = vsub.s32 1, %v652
        %v654 = vrot.slane %v439, %v653
        %v655 = vlaneseq
        %v656 = vshrl.u32 %v655, 7
        %v657 = vsub.s32 5, %v656
        %v658 = vrot.slane %v439, %v657
        %v661 = vlaneseq
        %v662 = vshrl.u32 %v661, 7
        %v663 = vsub.s32 1, %v662
        %v664 = vrot.slane %v654, %v663
        %v665 = vlaneseq
        %v666 = vshrl.u32 %v665, 7
        %v667 = vsub.s32 1, %v666
        %v668 = vrot.slane %v658, %v667
        %v669 = vmul.f32 %v621, %v664
        %v670 = vmul.f32 %v621, %v668
        %v671 = vmul.f32 %v625, %v664
        %v672 = vmul.f32 %v625, %v668
        %v673 = vmul.f32 %v629, %v664
        %v674 = vmul.f32 %v629, %v668
        %v675 = vmul.f32 %v633, %v664
        %v676 = vmul.f32 %v633, %v668
        %v677 = vmul.f32 %v637, %v664
        %v678 = vmul.f32 %v637, %v668
        %v679 = vmul.f32 %v641, %v664
        %v680 = vmul.f32 %v641, %v668
        %v681 = vmul.f32 %v645, %v664
        %v682 = vmul.f32 %v645, %v668
        %v683 = vmul.f32 %v649, %v664
        %v684 = vmul.f32 %v649, %v668
        %v685 = vadd.f32 %v603, %v669
        %v686 = vadd.f32 %v604, %v670
        %v687 = vadd.f32 %v605, %v671
        %v688 = vadd.f32 %v606, %v672
        %v689 = vadd.f32 %v607, %v673
        %v690 = vadd.f32 %v608, %v674
        %v691 = vadd.f32 %v609, %v675
        %v692 = vadd.f32 %v610, %v676
        %v693 = vadd.f32 %v611, %v677
        %v694 = vadd.f32 %v612, %v678
        %v695 = vadd.f32 %v613, %v679
        %v696 = vadd.f32 %v614, %v680
        %v697 = vadd.f32 %v615, %v681
        %v698 = vadd.f32 %v616, %v682
        %v699 = vadd.f32 %v617, %v683
        %v700 = vadd.f32 %v618, %v684
        %701 = vset.pattern.permute.xlu0 2
        %702 = vperm.xlu0 %701, %v440
        %v703 = vpop.permute.xlu0 %702
        %705 = vset.pattern.permute.xlu0 2
        %706 = vperm.xlu0 %705, %v441
        %v707 = vpop.permute.xlu0 %706
        %709 = vset.pattern.permute.xlu0 2
        %710 = vperm.xlu0 %709, %v442
        %v711 = vpop.permute.xlu0 %710
        %713 = vset.pattern.permute.xlu0 2
        %714 = vperm.xlu0 %713, %v443
        %v715 = vpop.permute.xlu0 %714
        %717 = vset.pattern.permute.xlu0 2
        %718 = vperm.xlu0 %717, %v444
        %v719 = vpop.permute.xlu0 %718
        %721 = vset.pattern.permute.xlu0 2
        %722 = vperm.xlu0 %721, %v445
        %v723 = vpop.permute.xlu0 %722
        %725 = vset.pattern.permute.xlu0 2
        %726 = vperm.xlu0 %725, %v446
        %v727 = vpop.permute.xlu0 %726
        %729 = vset.pattern.permute.xlu0 2
        %730 = vperm.xlu0 %729, %v447
        %v731 = vpop.permute.xlu0 %730
        %v733 = vlaneseq
        %v734 = vshrl.u32 %v733, 7
        %v735 = vsub.s32 2, %v734
        %v736 = vrot.slane %v439, %v735
        %v737 = vlaneseq
        %v738 = vshrl.u32 %v737, 7
        %v739 = vsub.s32 6, %v738
        %v740 = vrot.slane %v439, %v739
        %v743 = vlaneseq
        %v744 = vshrl.u32 %v743, 7
        %v745 = vsub.s32 2, %v744
        %v746 = vrot.slane %v736, %v745
        %v747 = vlaneseq
        %v748 = vshrl.u32 %v747, 7
        %v749 = vsub.s32 2, %v748
        %v750 = vrot.slane %v740, %v749
        %v751 = vmul.f32 %v703, %v746
        %v752 = vmul.f32 %v703, %v750
        %v753 = vmul.f32 %v707, %v746
        %v754 = vmul.f32 %v707, %v750
        %v755 = vmul.f32 %v711, %v746
        %v756 = vmul.f32 %v711, %v750
        %v757 = vmul.f32 %v715, %v746
        %v758 = vmul.f32 %v715, %v750
        %v759 = vmul.f32 %v719, %v746
        %v760 = vmul.f32 %v719, %v750
        %v761 = vmul.f32 %v723, %v746
        %v762 = vmul.f32 %v723, %v750
        %v763 = vmul.f32 %v727, %v746
        %v764 = vmul.f32 %v727, %v750
        %v765 = vmul.f32 %v731, %v746
        %v766 = vmul.f32 %v731, %v750
        %v767 = vadd.f32 %v685, %v751
        %v768 = vadd.f32 %v686, %v752
        %v769 = vadd.f32 %v687, %v753
        %v770 = vadd.f32 %v688, %v754
        %v771 = vadd.f32 %v689, %v755
        %v772 = vadd.f32 %v690, %v756
        %v773 = vadd.f32 %v691, %v757
        %v774 = vadd.f32 %v692, %v758
        %v775 = vadd.f32 %v693, %v759
        %v776 = vadd.f32 %v694, %v760
        %v777 = vadd.f32 %v695, %v761
        %v778 = vadd.f32 %v696, %v762
        %v779 = vadd.f32 %v697, %v763
        %v780 = vadd.f32 %v698, %v764
        %v781 = vadd.f32 %v699, %v765
        %v782 = vadd.f32 %v700, %v766
        %784 = vset.pattern.permute.xlu0 0
        %785 = vperm.xlu0 %784, %v526
        %v786 = vpop.permute.xlu0 %785
        %789 = vset.pattern.permute.xlu0 0
        %790 = vperm.xlu0 %789, %v527
        %v791 = vpop.permute.xlu0 %790
        %794 = vset.pattern.permute.xlu0 0
        %795 = vperm.xlu0 %794, %v528
        %v796 = vpop.permute.xlu0 %795
        %799 = vset.pattern.permute.xlu0 0
        %800 = vperm.xlu0 %799, %v529
        %v801 = vpop.permute.xlu0 %800
        %804 = vset.pattern.permute.xlu0 0
        %805 = vperm.xlu0 %804, %v530
        %v806 = vpop.permute.xlu0 %805
        %809 = vset.pattern.permute.xlu0 0
        %810 = vperm.xlu0 %809, %v531
        %v811 = vpop.permute.xlu0 %810
        %814 = vset.pattern.permute.xlu0 0
        %815 = vperm.xlu0 %814, %v532
        %v816 = vpop.permute.xlu0 %815
        %819 = vset.pattern.permute.xlu0 0
        %820 = vperm.xlu0 %819, %v533
        %v821 = vpop.permute.xlu0 %820
        %v824 = vlaneseq
        %v825 = vshrl.u32 %v824, 7
        %v826 = vsub.s32 0, %v825
        %v827 = vrot.slane %v543, %v826
        %v828 = vlaneseq
        %v829 = vshrl.u32 %v828, 7
        %v830 = vsub.s32 4, %v829
        %v831 = vrot.slane %v543, %v830
        %v834 = vlaneseq
        %v835 = vshrl.u32 %v834, 7
        %v836 = vsub.s32 0, %v835
        %v837 = vrot.slane %v827, %v836
        %v838 = vlaneseq
        %v839 = vshrl.u32 %v838, 7
        %v840 = vsub.s32 0, %v839
        %v841 = vrot.slane %v831, %v840
        %v842 = vadd.f32 %v786, %v837
        %v843 = vadd.f32 %v786, %v841
        %v844 = vadd.f32 %v791, %v837
        %v845 = vadd.f32 %v791, %v841
        %v846 = vadd.f32 %v796, %v837
        %v847 = vadd.f32 %v796, %v841
        %v848 = vadd.f32 %v801, %v837
        %v849 = vadd.f32 %v801, %v841
        %v850 = vadd.f32 %v806, %v837
        %v851 = vadd.f32 %v806, %v841
        %v852 = vadd.f32 %v811, %v837
        %v853 = vadd.f32 %v811, %v841
        %v854 = vadd.f32 %v816, %v837
        %v855 = vadd.f32 %v816, %v841
        %v856 = vadd.f32 %v821, %v837
        %v857 = vadd.f32 %v821, %v841
        %v858 = vmul.f32 %v767, 2.0
        %v859 = vmul.f32 %v768, 2.0
        %v860 = vmul.f32 %v769, 2.0
        %v861 = vmul.f32 %v770, 2.0
        %v862 = vmul.f32 %v771, 2.0
        %v863 = vmul.f32 %v772, 2.0
        %v864 = vmul.f32 %v773, 2.0
        %v865 = vmul.f32 %v774, 2.0
        %v866 = vmul.f32 %v775, 2.0
        %v867 = vmul.f32 %v776, 2.0
        %v868 = vmul.f32 %v777, 2.0
        %v869 = vmul.f32 %v778, 2.0
        %v870 = vmul.f32 %v779, 2.0
        %v871 = vmul.f32 %v780, 2.0
        %v872 = vmul.f32 %v781, 2.0
        %v873 = vmul.f32 %v782, 2.0
        %v874 = vsub.f32 %v842, %v858
        %v875 = vsub.f32 %v843, %v859
        %v876 = vsub.f32 %v844, %v860
        %v877 = vsub.f32 %v845, %v861
        %v878 = vsub.f32 %v846, %v862
        %v879 = vsub.f32 %v847, %v863
        %v880 = vsub.f32 %v848, %v864
        %v881 = vsub.f32 %v849, %v865
        %v882 = vsub.f32 %v850, %v866
        %v883 = vsub.f32 %v851, %v867
        %v884 = vsub.f32 %v852, %v868
        %v885 = vsub.f32 %v853, %v869
        %v886 = vsub.f32 %v854, %v870
        %v887 = vsub.f32 %v855, %v871
        %v888 = vsub.f32 %v856, %v872
        %v889 = vsub.f32 %v857, %v873
        %v890 = vmax.f32 %v874, 0.0
        %v891 = vmax.f32 %v875, 0.0
        %v892 = vmax.f32 %v876, 0.0
        %v893 = vmax.f32 %v877, 0.0
        %v894 = vmax.f32 %v878, 0.0
        %v895 = vmax.f32 %v879, 0.0
        %v896 = vmax.f32 %v880, 0.0
        %v897 = vmax.f32 %v881, 0.0
        %v898 = vmax.f32 %v882, 0.0
        %v899 = vmax.f32 %v883, 0.0
        %v900 = vmax.f32 %v884, 0.0
        %v901 = vmax.f32 %v885, 0.0
        %v902 = vmax.f32 %v886, 0.0
        %v903 = vmax.f32 %v887, 0.0
        %v904 = vmax.f32 %v888, 0.0
        %v905 = vmax.f32 %v889, 0.0
        %v906 = vlaneseq
        %v907 = vshrl.u32 %v906, 7
        %v908 = vadd.s32 %v907, 8
        %v909 = vadd.s32 %v907, 16
        %v910 = vadd.s32 %v907, 24
        %v911 = vadd.s32 %v907, 32
        %v912 = vadd.s32 %v907, 40
        %v913 = vadd.s32 %v907, 48
        %v914 = vadd.s32 %v907, 56
        %v931 = vand.u32 %v890, 4294967232
        %v932 = vand.u32 %v891, 4294967232
        %v933 = vand.u32 %v892, 4294967232
        %v934 = vand.u32 %v893, 4294967232
        %v935 = vand.u32 %v894, 4294967232
        %v936 = vand.u32 %v895, 4294967232
        %v937 = vand.u32 %v896, 4294967232
        %v938 = vand.u32 %v897, 4294967232
        %v939 = vand.u32 %v898, 4294967232
        %v940 = vand.u32 %v899, 4294967232
        %v941 = vand.u32 %v900, 4294967232
        %v942 = vand.u32 %v901, 4294967232
        %v943 = vand.u32 %v902, 4294967232
        %v944 = vand.u32 %v903, 4294967232
        %v945 = vand.u32 %v904, 4294967232
        %v946 = vand.u32 %v905, 4294967232
        %v947 = vor.u32 %v931, %v907
        %v948 = vor.u32 %v932, %v907
        %v949 = vor.u32 %v933, %v908
        %v950 = vor.u32 %v934, %v908
        %v951 = vor.u32 %v935, %v909
        %v952 = vor.u32 %v936, %v909
        %v953 = vor.u32 %v937, %v910
        %v954 = vor.u32 %v938, %v910
        %v955 = vor.u32 %v939, %v911
        %v956 = vor.u32 %v940, %v911
        %v957 = vor.u32 %v941, %v912
        %v958 = vor.u32 %v942, %v912
        %v959 = vor.u32 %v943, %v913
        %v960 = vor.u32 %v944, %v913
        %v961 = vor.u32 %v945, %v914
        %v962 = vor.u32 %v946, %v914
        %vm963 = vcmp.lt.s32.totalorder %v947, %v951
        %v964 = vsel %vm963, %v947, %v951
        %vm965 = vcmp.lt.s32.totalorder %v949, %v953
        %v966 = vsel %vm965, %v949, %v953
        %vm967 = vcmp.lt.s32.totalorder %v964, %v955
        %v968 = vsel %vm967, %v964, %v955
        %vm969 = vcmp.lt.s32.totalorder %v966, %v957
        %v970 = vsel %vm969, %v966, %v957
        %vm971 = vcmp.lt.s32.totalorder %v968, %v959
        %v972 = vsel %vm971, %v968, %v959
        %vm973 = vcmp.lt.s32.totalorder %v970, %v961
        %v974 = vsel %vm973, %v970, %v961
        %vm975 = vcmp.lt.s32.totalorder %v972, %v974
        %v976 = vsel %vm975, %v972, %v974
        %v977 = vrot.slane %v976, 4
        %vm978 = vcmp.lt.s32.totalorder %v976, %v977
        %v979 = vsel %vm978, %v976, %v977
        %v980 = vrot.slane %v979, 2
        %vm981 = vcmp.lt.s32.totalorder %v979, %v980
        %v982 = vsel %vm981, %v979, %v980
        %v983 = vrot.slane %v982, 1
        %vm984 = vcmp.lt.s32.totalorder %v982, %v983
        %v985 = vsel %vm984, %v982, %v983
        %vm986 = vcmp.lt.s32.totalorder %v948, %v952
        %v987 = vsel %vm986, %v948, %v952
        %vm988 = vcmp.lt.s32.totalorder %v950, %v954
        %v989 = vsel %vm988, %v950, %v954
        %vm990 = vcmp.lt.s32.totalorder %v987, %v956
        %v991 = vsel %vm990, %v987, %v956
        %vm992 = vcmp.lt.s32.totalorder %v989, %v958
        %v993 = vsel %vm992, %v989, %v958
        %vm994 = vcmp.lt.s32.totalorder %v991, %v960
        %v995 = vsel %vm994, %v991, %v960
        %vm996 = vcmp.lt.s32.totalorder %v993, %v962
        %v997 = vsel %vm996, %v993, %v962
        %vm998 = vcmp.lt.s32.totalorder %v995, %v997
        %v999 = vsel %vm998, %v995, %v997
        %v1000 = vrot.slane %v999, 4
        %vm1001 = vcmp.lt.s32.totalorder %v999, %v1000
        %v1002 = vsel %vm1001, %v999, %v1000
        %v1003 = vrot.slane %v1002, 2
        %vm1004 = vcmp.lt.s32.totalorder %v1002, %v1003
        %v1005 = vsel %vm1004, %v1002, %v1003
        %v1006 = vrot.slane %v1005, 1
        %vm1007 = vcmp.lt.s32.totalorder %v1005, %v1006
        %v1008 = vsel %vm1007, %v1005, %v1006
        %v1009 = vand.u32 %v985, 63
        %v1010 = vand.u32 %v1008, 63
        %v1011 = vand.u32 %v985, 4294967232
        %v1012 = vand.u32 %v1008, 4294967232
        %v1015 = vadd.f32 %v1011, 1e-08
        %v1016 = vadd.f32 %v1012, 1e-08
        %v1017 = vrcp.pop %v1015
        %v1018 = vmul.f32 1.0, %v1017
        %v1019 = vrcp.pop %v1016
        %v1020 = vmul.f32 1.0, %v1019
        %vm1021 = vcmp.eq.s32.totalorder %v907, %v1009
        %vm1022 = vcmp.eq.s32.totalorder %v907, %v1010
        %vm1023 = vcmp.eq.s32.totalorder %v908, %v1009
        %vm1024 = vcmp.eq.s32.totalorder %v908, %v1010
        %vm1025 = vcmp.eq.s32.totalorder %v909, %v1009
        %vm1026 = vcmp.eq.s32.totalorder %v909, %v1010
        %vm1027 = vcmp.eq.s32.totalorder %v910, %v1009
        %vm1028 = vcmp.eq.s32.totalorder %v910, %v1010
        %vm1029 = vcmp.eq.s32.totalorder %v911, %v1009
        %vm1030 = vcmp.eq.s32.totalorder %v911, %v1010
        %vm1031 = vcmp.eq.s32.totalorder %v912, %v1009
        %vm1032 = vcmp.eq.s32.totalorder %v912, %v1010
        %vm1033 = vcmp.eq.s32.totalorder %v913, %v1009
        %vm1034 = vcmp.eq.s32.totalorder %v913, %v1010
        %vm1035 = vcmp.eq.s32.totalorder %v914, %v1009
        %vm1036 = vcmp.eq.s32.totalorder %v914, %v1010
        %v1037 = vsel %vm1021, %v1018, 0.0
        %v1038 = vsel %vm1022, %v1020, 0.0
        %v1039 = vsel %vm1023, %v1018, 0.0
        %v1040 = vsel %vm1024, %v1020, 0.0
        %v1041 = vsel %vm1025, %v1018, 0.0
        %v1042 = vsel %vm1026, %v1020, 0.0
        %v1043 = vsel %vm1027, %v1018, 0.0
        %v1044 = vsel %vm1028, %v1020, 0.0
        %v1045 = vsel %vm1029, %v1018, 0.0
        %v1046 = vsel %vm1030, %v1020, 0.0
        %v1047 = vsel %vm1031, %v1018, 0.0
        %v1048 = vsel %vm1032, %v1020, 0.0
        %v1049 = vsel %vm1033, %v1018, 0.0
        %v1050 = vsel %vm1034, %v1020, 0.0
        %v1051 = vsel %vm1035, %v1018, 0.0
        %v1052 = vsel %vm1036, %v1020, 0.0
        %v1053 = vadd.f32 %v1037, 0.0
        %v1054 = vadd.f32 %v1038, 0.0
        %v1055 = vadd.f32 %v1039, 0.0
        %v1056 = vadd.f32 %v1040, 0.0
        %v1057 = vadd.f32 %v1041, 0.0
        %v1058 = vadd.f32 %v1042, 0.0
        %v1059 = vadd.f32 %v1043, 0.0
        %v1060 = vadd.f32 %v1044, 0.0
        %v1061 = vadd.f32 %v1045, 0.0
        %v1062 = vadd.f32 %v1046, 0.0
        %v1063 = vadd.f32 %v1047, 0.0
        %v1064 = vadd.f32 %v1048, 0.0
        %v1065 = vadd.f32 %v1049, 0.0
        %v1066 = vadd.f32 %v1050, 0.0
        %v1067 = vadd.f32 %v1051, 0.0
        %v1068 = vadd.f32 %v1052, 0.0
        %v1069 = vadd.f32 %v1018, 0.0
        %v1070 = vadd.f32 %v1020, 0.0
        %v1071 = vsel %vm1021, 2147483647, %v947
        %v1072 = vsel %vm1022, 2147483647, %v948
        %v1073 = vsel %vm1023, 2147483647, %v949
        %v1074 = vsel %vm1024, 2147483647, %v950
        %v1075 = vsel %vm1025, 2147483647, %v951
        %v1076 = vsel %vm1026, 2147483647, %v952
        %v1077 = vsel %vm1027, 2147483647, %v953
        %v1078 = vsel %vm1028, 2147483647, %v954
        %v1079 = vsel %vm1029, 2147483647, %v955
        %v1080 = vsel %vm1030, 2147483647, %v956
        %v1081 = vsel %vm1031, 2147483647, %v957
        %v1082 = vsel %vm1032, 2147483647, %v958
        %v1083 = vsel %vm1033, 2147483647, %v959
        %v1084 = vsel %vm1034, 2147483647, %v960
        %v1085 = vsel %vm1035, 2147483647, %v961
        %v1086 = vsel %vm1036, 2147483647, %v962
        %vm1087 = vcmp.lt.s32.totalorder %v1071, %v1075
        %v1088 = vsel %vm1087, %v1071, %v1075
        %vm1089 = vcmp.lt.s32.totalorder %v1073, %v1077
        %v1090 = vsel %vm1089, %v1073, %v1077
        %vm1091 = vcmp.lt.s32.totalorder %v1088, %v1079
        %v1092 = vsel %vm1091, %v1088, %v1079
        %vm1093 = vcmp.lt.s32.totalorder %v1090, %v1081
        %v1094 = vsel %vm1093, %v1090, %v1081
        %vm1095 = vcmp.lt.s32.totalorder %v1092, %v1083
        %v1096 = vsel %vm1095, %v1092, %v1083
        %vm1097 = vcmp.lt.s32.totalorder %v1094, %v1085
        %v1098 = vsel %vm1097, %v1094, %v1085
        %vm1099 = vcmp.lt.s32.totalorder %v1096, %v1098
        %v1100 = vsel %vm1099, %v1096, %v1098
        %v1101 = vrot.slane %v1100, 4
        %vm1102 = vcmp.lt.s32.totalorder %v1100, %v1101
        %v1103 = vsel %vm1102, %v1100, %v1101
        %v1104 = vrot.slane %v1103, 2
        %vm1105 = vcmp.lt.s32.totalorder %v1103, %v1104
        %v1106 = vsel %vm1105, %v1103, %v1104
        %v1107 = vrot.slane %v1106, 1
        %vm1108 = vcmp.lt.s32.totalorder %v1106, %v1107
        %v1109 = vsel %vm1108, %v1106, %v1107
        %vm1110 = vcmp.lt.s32.totalorder %v1072, %v1076
        %v1111 = vsel %vm1110, %v1072, %v1076
        %vm1112 = vcmp.lt.s32.totalorder %v1074, %v1078
        %v1113 = vsel %vm1112, %v1074, %v1078
        %vm1114 = vcmp.lt.s32.totalorder %v1111, %v1080
        %v1115 = vsel %vm1114, %v1111, %v1080
        %vm1116 = vcmp.lt.s32.totalorder %v1113, %v1082
        %v1117 = vsel %vm1116, %v1113, %v1082
        %vm1118 = vcmp.lt.s32.totalorder %v1115, %v1084
        %v1119 = vsel %vm1118, %v1115, %v1084
        %vm1120 = vcmp.lt.s32.totalorder %v1117, %v1086
        %v1121 = vsel %vm1120, %v1117, %v1086
        %vm1122 = vcmp.lt.s32.totalorder %v1119, %v1121
        %v1123 = vsel %vm1122, %v1119, %v1121
        %v1124 = vrot.slane %v1123, 4
        %vm1125 = vcmp.lt.s32.totalorder %v1123, %v1124
        %v1126 = vsel %vm1125, %v1123, %v1124
        %v1127 = vrot.slane %v1126, 2
        %vm1128 = vcmp.lt.s32.totalorder %v1126, %v1127
        %v1129 = vsel %vm1128, %v1126, %v1127
        %v1130 = vrot.slane %v1129, 1
        %vm1131 = vcmp.lt.s32.totalorder %v1129, %v1130
        %v1132 = vsel %vm1131, %v1129, %v1130
        %v1133 = vand.u32 %v1109, 63
        %v1134 = vand.u32 %v1132, 63
        %v1135 = vand.u32 %v1109, 4294967232
        %v1136 = vand.u32 %v1132, 4294967232
        %v1139 = vadd.f32 %v1135, 1e-08
        %v1140 = vadd.f32 %v1136, 1e-08
        %v1141 = vrcp.pop %v1139
        %v1142 = vmul.f32 1.0, %v1141
        %v1143 = vrcp.pop %v1140
        %v1144 = vmul.f32 1.0, %v1143
        %vm1145 = vcmp.eq.s32.totalorder %v907, %v1133
        %vm1146 = vcmp.eq.s32.totalorder %v907, %v1134
        %vm1147 = vcmp.eq.s32.totalorder %v908, %v1133
        %vm1148 = vcmp.eq.s32.totalorder %v908, %v1134
        %vm1149 = vcmp.eq.s32.totalorder %v909, %v1133
        %vm1150 = vcmp.eq.s32.totalorder %v909, %v1134
        %vm1151 = vcmp.eq.s32.totalorder %v910, %v1133
        %vm1152 = vcmp.eq.s32.totalorder %v910, %v1134
        %vm1153 = vcmp.eq.s32.totalorder %v911, %v1133
        %vm1154 = vcmp.eq.s32.totalorder %v911, %v1134
        %vm1155 = vcmp.eq.s32.totalorder %v912, %v1133
        %vm1156 = vcmp.eq.s32.totalorder %v912, %v1134
        %vm1157 = vcmp.eq.s32.totalorder %v913, %v1133
        %vm1158 = vcmp.eq.s32.totalorder %v913, %v1134
        %vm1159 = vcmp.eq.s32.totalorder %v914, %v1133
        %vm1160 = vcmp.eq.s32.totalorder %v914, %v1134
        %v1161 = vsel %vm1145, %v1142, 0.0
        %v1162 = vsel %vm1146, %v1144, 0.0
        %v1163 = vsel %vm1147, %v1142, 0.0
        %v1164 = vsel %vm1148, %v1144, 0.0
        %v1165 = vsel %vm1149, %v1142, 0.0
        %v1166 = vsel %vm1150, %v1144, 0.0
        %v1167 = vsel %vm1151, %v1142, 0.0
        %v1168 = vsel %vm1152, %v1144, 0.0
        %v1169 = vsel %vm1153, %v1142, 0.0
        %v1170 = vsel %vm1154, %v1144, 0.0
        %v1171 = vsel %vm1155, %v1142, 0.0
        %v1172 = vsel %vm1156, %v1144, 0.0
        %v1173 = vsel %vm1157, %v1142, 0.0
        %v1174 = vsel %vm1158, %v1144, 0.0
        %v1175 = vsel %vm1159, %v1142, 0.0
        %v1176 = vsel %vm1160, %v1144, 0.0
        %v1177 = vadd.f32 %v1053, %v1161
        %v1178 = vadd.f32 %v1054, %v1162
        %v1179 = vadd.f32 %v1055, %v1163
        %v1180 = vadd.f32 %v1056, %v1164
        %v1181 = vadd.f32 %v1057, %v1165
        %v1182 = vadd.f32 %v1058, %v1166
        %v1183 = vadd.f32 %v1059, %v1167
        %v1184 = vadd.f32 %v1060, %v1168
        %v1185 = vadd.f32 %v1061, %v1169
        %v1186 = vadd.f32 %v1062, %v1170
        %v1187 = vadd.f32 %v1063, %v1171
        %v1188 = vadd.f32 %v1064, %v1172
        %v1189 = vadd.f32 %v1065, %v1173
        %v1190 = vadd.f32 %v1066, %v1174
        %v1191 = vadd.f32 %v1067, %v1175
        %v1192 = vadd.f32 %v1068, %v1176
        %v1193 = vadd.f32 %v1069, %v1142
        %v1194 = vadd.f32 %v1070, %v1144
        %v1195 = vsel %vm1145, 2147483647, %v1071
        %v1196 = vsel %vm1146, 2147483647, %v1072
        %v1197 = vsel %vm1147, 2147483647, %v1073
        %v1198 = vsel %vm1148, 2147483647, %v1074
        %v1199 = vsel %vm1149, 2147483647, %v1075
        %v1200 = vsel %vm1150, 2147483647, %v1076
        %v1201 = vsel %vm1151, 2147483647, %v1077
        %v1202 = vsel %vm1152, 2147483647, %v1078
        %v1203 = vsel %vm1153, 2147483647, %v1079
        %v1204 = vsel %vm1154, 2147483647, %v1080
        %v1205 = vsel %vm1155, 2147483647, %v1081
        %v1206 = vsel %vm1156, 2147483647, %v1082
        %v1207 = vsel %vm1157, 2147483647, %v1083
        %v1208 = vsel %vm1158, 2147483647, %v1084
        %v1209 = vsel %vm1159, 2147483647, %v1085
        %v1210 = vsel %vm1160, 2147483647, %v1086
        %vm1211 = vcmp.lt.s32.totalorder %v1195, %v1199
        %v1212 = vsel %vm1211, %v1195, %v1199
        %vm1213 = vcmp.lt.s32.totalorder %v1197, %v1201
        %v1214 = vsel %vm1213, %v1197, %v1201
        %vm1215 = vcmp.lt.s32.totalorder %v1212, %v1203
        %v1216 = vsel %vm1215, %v1212, %v1203
        %vm1217 = vcmp.lt.s32.totalorder %v1214, %v1205
        %v1218 = vsel %vm1217, %v1214, %v1205
        %vm1219 = vcmp.lt.s32.totalorder %v1216, %v1207
        %v1220 = vsel %vm1219, %v1216, %v1207
        %vm1221 = vcmp.lt.s32.totalorder %v1218, %v1209
        %v1222 = vsel %vm1221, %v1218, %v1209
        %vm1223 = vcmp.lt.s32.totalorder %v1220, %v1222
        %v1224 = vsel %vm1223, %v1220, %v1222
        %v1225 = vrot.slane %v1224, 4
        %vm1226 = vcmp.lt.s32.totalorder %v1224, %v1225
        %v1227 = vsel %vm1226, %v1224, %v1225
        %v1228 = vrot.slane %v1227, 2
        %vm1229 = vcmp.lt.s32.totalorder %v1227, %v1228
        %v1230 = vsel %vm1229, %v1227, %v1228
        %v1231 = vrot.slane %v1230, 1
        %vm1232 = vcmp.lt.s32.totalorder %v1230, %v1231
        %v1233 = vsel %vm1232, %v1230, %v1231
        %vm1234 = vcmp.lt.s32.totalorder %v1196, %v1200
        %v1235 = vsel %vm1234, %v1196, %v1200
        %vm1236 = vcmp.lt.s32.totalorder %v1198, %v1202
        %v1237 = vsel %vm1236, %v1198, %v1202
        %vm1238 = vcmp.lt.s32.totalorder %v1235, %v1204
        %v1239 = vsel %vm1238, %v1235, %v1204
        %vm1240 = vcmp.lt.s32.totalorder %v1237, %v1206
        %v1241 = vsel %vm1240, %v1237, %v1206
        %vm1242 = vcmp.lt.s32.totalorder %v1239, %v1208
        %v1243 = vsel %vm1242, %v1239, %v1208
        %vm1244 = vcmp.lt.s32.totalorder %v1241, %v1210
        %v1245 = vsel %vm1244, %v1241, %v1210
        %vm1246 = vcmp.lt.s32.totalorder %v1243, %v1245
        %v1247 = vsel %vm1246, %v1243, %v1245
        %v1248 = vrot.slane %v1247, 4
        %vm1249 = vcmp.lt.s32.totalorder %v1247, %v1248
        %v1250 = vsel %vm1249, %v1247, %v1248
        %v1251 = vrot.slane %v1250, 2
        %vm1252 = vcmp.lt.s32.totalorder %v1250, %v1251
        %v1253 = vsel %vm1252, %v1250, %v1251
        %v1254 = vrot.slane %v1253, 1
        %vm1255 = vcmp.lt.s32.totalorder %v1253, %v1254
        %v1256 = vsel %vm1255, %v1253, %v1254
        %v1257 = vand.u32 %v1233, 63
        %v1258 = vand.u32 %v1256, 63
        %v1259 = vand.u32 %v1233, 4294967232
        %v1260 = vand.u32 %v1256, 4294967232
        %v1263 = vadd.f32 %v1259, 1e-08
        %v1264 = vadd.f32 %v1260, 1e-08
        %v1265 = vrcp.pop %v1263
        %v1266 = vmul.f32 1.0, %v1265
        %v1267 = vrcp.pop %v1264
        %v1268 = vmul.f32 1.0, %v1267
        %vm1269 = vcmp.eq.s32.totalorder %v907, %v1257
        %vm1270 = vcmp.eq.s32.totalorder %v907, %v1258
        %vm1271 = vcmp.eq.s32.totalorder %v908, %v1257
        %vm1272 = vcmp.eq.s32.totalorder %v908, %v1258
        %vm1273 = vcmp.eq.s32.totalorder %v909, %v1257
        %vm1274 = vcmp.eq.s32.totalorder %v909, %v1258
        %vm1275 = vcmp.eq.s32.totalorder %v910, %v1257
        %vm1276 = vcmp.eq.s32.totalorder %v910, %v1258
        %vm1277 = vcmp.eq.s32.totalorder %v911, %v1257
        %vm1278 = vcmp.eq.s32.totalorder %v911, %v1258
        %vm1279 = vcmp.eq.s32.totalorder %v912, %v1257
        %vm1280 = vcmp.eq.s32.totalorder %v912, %v1258
        %vm1281 = vcmp.eq.s32.totalorder %v913, %v1257
        %vm1282 = vcmp.eq.s32.totalorder %v913, %v1258
        %vm1283 = vcmp.eq.s32.totalorder %v914, %v1257
        %vm1284 = vcmp.eq.s32.totalorder %v914, %v1258
        %v1285 = vsel %vm1269, %v1266, 0.0
        %v1286 = vsel %vm1270, %v1268, 0.0
        %v1287 = vsel %vm1271, %v1266, 0.0
        %v1288 = vsel %vm1272, %v1268, 0.0
        %v1289 = vsel %vm1273, %v1266, 0.0
        %v1290 = vsel %vm1274, %v1268, 0.0
        %v1291 = vsel %vm1275, %v1266, 0.0
        %v1292 = vsel %vm1276, %v1268, 0.0
        %v1293 = vsel %vm1277, %v1266, 0.0
        %v1294 = vsel %vm1278, %v1268, 0.0
        %v1295 = vsel %vm1279, %v1266, 0.0
        %v1296 = vsel %vm1280, %v1268, 0.0
        %v1297 = vsel %vm1281, %v1266, 0.0
        %v1298 = vsel %vm1282, %v1268, 0.0
        %v1299 = vsel %vm1283, %v1266, 0.0
        %v1300 = vsel %vm1284, %v1268, 0.0
        %v1301 = vadd.f32 %v1177, %v1285
        %v1302 = vadd.f32 %v1178, %v1286
        %v1303 = vadd.f32 %v1179, %v1287
        %v1304 = vadd.f32 %v1180, %v1288
        %v1305 = vadd.f32 %v1181, %v1289
        %v1306 = vadd.f32 %v1182, %v1290
        %v1307 = vadd.f32 %v1183, %v1291
        %v1308 = vadd.f32 %v1184, %v1292
        %v1309 = vadd.f32 %v1185, %v1293
        %v1310 = vadd.f32 %v1186, %v1294
        %v1311 = vadd.f32 %v1187, %v1295
        %v1312 = vadd.f32 %v1188, %v1296
        %v1313 = vadd.f32 %v1189, %v1297
        %v1314 = vadd.f32 %v1190, %v1298
        %v1315 = vadd.f32 %v1191, %v1299
        %v1316 = vadd.f32 %v1192, %v1300
        %v1317 = vadd.f32 %v1193, %v1266
        %v1318 = vadd.f32 %v1194, %v1268
        %v1319 = vrcp.pop %v1317
        %v1320 = vrcp.pop %v1318
        %v1321 = vpack.c.bf16 %v1303, %v1301
        %v1322 = vpack.c.bf16 %v1304, %v1302
        %v1323 = vpack.c.bf16 %v1307, %v1305
        %v1324 = vpack.c.bf16 %v1308, %v1306
        %v1325 = vpack.c.bf16 %v1311, %v1309
        %v1326 = vpack.c.bf16 %v1312, %v1310
        %v1327 = vpack.c.bf16 %v1315, %v1313
        %v1328 = vpack.c.bf16 %v1316, %v1314
        %v1333 = vunpack.c.l.b16 %v448
        %v1334 = vunpack.c.l.b16 %v449
        %v1335 = vunpack.c.l.b16 %v450
        %v1336 = vunpack.c.l.b16 %v451
        %v1337 = vpack.c.b16 %v1334, %v1333
        %v1338 = vpack.c.b16 %v1336, %v1335
        %vm1339 = vcmask 523264
        %v1341 = vsel %vm1339, %v1337, 0
        %v1344 = vsel %vm1339, %v1338, 0
        %1346 = vmatprep.subr.bf16.mxu0 %v1322
        %1347 = vmatpush1.bf16.msra.mxu0 %v1321
        %1348 = vmatprep.subr.bf16.mxu0 %v1324
        %1349 = vmatpush1.bf16.msra.mxu0 %v1323
        %1350 = vmatprep.subr.bf16.mxu0 %v1326
        %1351 = vmatpush1.bf16.msra.mxu0 %v1325
        %1352 = vmatprep.subr.bf16.mxu0 %v1328
        %1353 = vmatpush1.bf16.msra.mxu0 %v1327
        %1354 = vmatprep.subr.bf16.mxu0 0
        %1355 = vmatpush1.bf16.msra.mxu0 0
        %1356 = vmatprep.subr.bf16.mxu0 0
        %1357 = vmatpush1.bf16.msra.mxu0 0
        %1358 = vmatprep.subr.bf16.mxu0 0
        %1359 = vmatpush1.bf16.msra.mxu0 0
        %1360 = vmatprep.subr.bf16.mxu0 0
        %1361 = vmatpush1.bf16.msra.mxu0 0
        %1362 = vmatprep.subr.bf16.mxu0 0
        %1363 = vmatpush1.bf16.msra.mxu0 0
        %1364 = vmatprep.subr.bf16.mxu0 0
        %1365 = vmatpush1.bf16.msra.mxu0 0
        %1366 = vmatprep.subr.bf16.mxu0 0
        %1367 = vmatpush1.bf16.msra.mxu0 0
        %1368 = vmatprep.subr.bf16.mxu0 0
        %1369 = vmatpush1.bf16.msra.mxu0 0
        %1370 = vmatprep.subr.bf16.mxu0 0
        %1371 = vmatpush1.bf16.msra.mxu0 0
        %1372 = vmatprep.subr.bf16.mxu0 0
        %1373 = vmatpush1.bf16.msra.mxu0 0
        %1374 = vmatprep.subr.bf16.mxu0 0
        %1375 = vmatpush1.bf16.msra.mxu0 0
        %1376 = vmatprep.subr.bf16.mxu0 0
        %1377 = vmatpush1.bf16.msra.mxu0 0
        %1378 = vmatprep.mubr.bf16.mxu0 0
        %1379 = vmatmul.mubr.bf16.gmra.mrb[0].mxu0 %v1341
        %v1380 = vpop.f32.mrb[0].mxu0
        %v1381 = vadd.f32 0.0, %v1380
        %v1382 = vpop.f32.mrb[0].mxu0
        %v1383 = vadd.f32 0.0, %v1382
        %v1384 = vpop.f32.mrb[0].mxu0
        %v1385 = vadd.f32 0.0, %v1384
        %v1386 = vpop.f32.mrb[0].mxu0
        %v1387 = vadd.f32 0.0, %v1386
        %1388 = vmatprep.mubr.bf16.mxu0 0
        %1389 = vmatmul.mubr.bf16.gmra.mrb[0].mxu0 %v1344
        %v1390 = vpop.f32.mrb[0].mxu0
        %v1391 = vadd.f32 0.0, %v1390
        %v1392 = vpop.f32.mrb[0].mxu0
        %v1393 = vadd.f32 0.0, %v1392
        %v1394 = vpop.f32.mrb[0].mxu0
        %v1395 = vadd.f32 0.0, %v1394
        %v1396 = vpop.f32.mrb[0].mxu0
        %v1397 = vadd.f32 0.0, %v1396
        %1398 = vdwg.mxu0
        %v1399 = vmul.f32 %v1381, %v1319
        %v1400 = vmul.f32 %v1383, %v1320
        %v1401 = vmul.f32 %v1385, %v1319
        %v1402 = vmul.f32 %v1387, %v1320
        %v1403 = vmul.f32 %v1391, %v1319
        %v1404 = vmul.f32 %v1393, %v1320
        %v1405 = vmul.f32 %v1395, %v1319
        %v1406 = vmul.f32 %v1397, %v1320
        %v1407 = vld [vmem:[%s4] sm:$0xf]
        %v1408 = vld [vmem:[%s4 + $0x4] sm:$0xf]
        %v1409 = vld [vmem:[%s4 + $0x8] sm:$0xf]
        %v1410 = vld [vmem:[%s4 + $0xc] sm:$0xf]
        %v1411 = vld [vmem:[%s4 + $0x10] sm:$0xf]
        %v1412 = vld [vmem:[%s4 + $0x14] sm:$0xf]
        %v1413 = vld [vmem:[%s4 + $0x18] sm:$0xf]
        %v1414 = vld [vmem:[%s4 + $0x1c] sm:$0xf]
        %v1415 = vld [vmem:[%s5] sm:$0xf]
        %v1416 = vld [vmem:[%s5 + $0x4] sm:$0xf]
        %v1417 = vld [vmem:[%s5 + $0x8] sm:$0xf]
        %v1418 = vld [vmem:[%s5 + $0xc] sm:$0xf]
        %v1419 = vld [vmem:[%s5 + $0x10] sm:$0xf]
        %v1420 = vld [vmem:[%s5 + $0x14] sm:$0xf]
        %v1421 = vld [vmem:[%s5 + $0x18] sm:$0xf]
        %v1422 = vld [vmem:[%s5 + $0x1c] sm:$0xf]
        %v1423 = vld [vmem:[%s6] sm:$0xff]
        %v1424 = vld [vmem:[%s6 + $0x8] sm:$0xff]
        %v1425 = vld [vmem:[%s6 + $0x10] sm:$0xff]
        %v1426 = vld [vmem:[%s6 + $0x18] sm:$0xff]
        %v1427 = vld [vmem:[%s6 + $0x20] sm:$0xff]
        %v1428 = vld [vmem:[%s6 + $0x28] sm:$0xff]
        %v1429 = vld [vmem:[%s6 + $0x30] sm:$0xff]
        %v1430 = vld [vmem:[%s6 + $0x38] sm:$0xff]
        %v1431 = vpack.c.bf16 %v1401, %v1399
        %v1432 = vpack.c.bf16 %v1402, %v1400
        %v1433 = vpack.c.bf16 %v1405, %v1403
        %v1434 = vpack.c.bf16 %v1406, %v1404
        %v1443 = vunpack.c.l.b16 %v1415
        %v1444 = vunpack.c.l.b16 %v1416
        %v1445 = vunpack.c.l.b16 %v1417
        %v1446 = vunpack.c.l.b16 %v1418
        %v1447 = vunpack.c.l.b16 %v1419
        %v1448 = vunpack.c.l.b16 %v1420
        %v1449 = vunpack.c.l.b16 %v1421
        %v1450 = vunpack.c.l.b16 %v1422
        %v1451 = vpack.c.b16 %v1444, %v1443
        %v1452 = vpack.c.b16 %v1446, %v1445
        %v1453 = vpack.c.b16 %v1448, %v1447
        %v1454 = vpack.c.b16 %v1450, %v1449
        %v1457 = vunpack.c.l.b16 %v452
        %v1458 = vunpack.c.h.b16 %v452
        %v1459 = vunpack.c.l.b16 %v453
        %v1460 = vunpack.c.h.b16 %v453
        %v1461 = vpack.c.b16 %v1459, %v1457
        %v1462 = vpack.c.b16 %v1460, %v1458
        %vm1465 = vcmask 130048
        %v1467 = vsel %vm1465, %v1451, 0
        %v1470 = vsel %vm1465, %v1452, 0
        %v1473 = vsel %vm1465, %v1453, 0
        %v1476 = vsel %vm1465, %v1454, 0
        %1478 = vmatprep.subr.bf16.mxu0 %v1462
        %1479 = vmatpush1.bf16.msra.mxu0 %v1461
        %1480 = vmatprep.subr.bf16.mxu0 0
        %1481 = vmatpush1.bf16.msra.mxu0 0
        %1482 = vmatprep.subr.bf16.mxu0 0
        %1483 = vmatpush1.bf16.msra.mxu0 0
        %1484 = vmatprep.subr.bf16.mxu0 0
        %1485 = vmatpush1.bf16.msra.mxu0 0
        %1486 = vmatprep.subr.bf16.mxu0 0
        %1487 = vmatpush1.bf16.msra.mxu0 0
        %1488 = vmatprep.subr.bf16.mxu0 0
        %1489 = vmatpush1.bf16.msra.mxu0 0
        %1490 = vmatprep.subr.bf16.mxu0 0
        %1491 = vmatpush1.bf16.msra.mxu0 0
        %1492 = vmatprep.subr.bf16.mxu0 0
        %1493 = vmatpush1.bf16.msra.mxu0 0
        %1494 = vmatprep.subr.bf16.mxu0 0
        %1495 = vmatpush1.bf16.msra.mxu0 0
        %1496 = vmatprep.subr.bf16.mxu0 0
        %1497 = vmatpush1.bf16.msra.mxu0 0
        %1498 = vmatprep.subr.bf16.mxu0 0
        %1499 = vmatpush1.bf16.msra.mxu0 0
        %1500 = vmatprep.subr.bf16.mxu0 0
        %1501 = vmatpush1.bf16.msra.mxu0 0
        %1502 = vmatprep.subr.bf16.mxu0 0
        %1503 = vmatpush1.bf16.msra.mxu0 0
        %1504 = vmatprep.subr.bf16.mxu0 0
        %1505 = vmatpush1.bf16.msra.mxu0 0
        %1506 = vmatprep.subr.bf16.mxu0 0
        %1507 = vmatpush1.bf16.msra.mxu0 0
        %1508 = vmatprep.subr.bf16.mxu0 0
        %1509 = vmatpush1.bf16.msra.mxu0 0
        %1510 = vmatprep.mubr.bf16.mxu0 0
        %1511 = vmatmul.mubr.bf16.gmra.mrb[0].mxu0 %v1467
        %v1512 = vpop.f32.mrb[0].mxu0
        %v1513 = vadd.f32 0.0, %v1512
        %v1514 = vpop.f32.mrb[0].mxu0
        %v1515 = vadd.f32 0.0, %v1514
        %v1516 = vpop.f32.mrb[0].mxu0
        %v1517 = vadd.f32 0.0, %v1516
        %v1518 = vpop.f32.mrb[0].mxu0
        %v1519 = vadd.f32 0.0, %v1518
        %1520 = vmatprep.mubr.bf16.mxu0 0
        %1521 = vmatmul.mubr.bf16.gmra.mrb[0].mxu0 %v1470
        %v1522 = vpop.f32.mrb[0].mxu0
        %v1523 = vadd.f32 0.0, %v1522
        %v1524 = vpop.f32.mrb[0].mxu0
        %v1525 = vadd.f32 0.0, %v1524
        %v1526 = vpop.f32.mrb[0].mxu0
        %v1527 = vadd.f32 0.0, %v1526
        %v1528 = vpop.f32.mrb[0].mxu0
        %v1529 = vadd.f32 0.0, %v1528
        %1530 = vmatprep.mubr.bf16.mxu0 0
        %1531 = vmatmul.mubr.bf16.gmra.mrb[0].mxu0 %v1473
        %v1532 = vpop.f32.mrb[0].mxu0
        %v1533 = vadd.f32 0.0, %v1532
        %v1534 = vpop.f32.mrb[0].mxu0
        %v1535 = vadd.f32 0.0, %v1534
        %v1536 = vpop.f32.mrb[0].mxu0
        %v1537 = vadd.f32 0.0, %v1536
        %v1538 = vpop.f32.mrb[0].mxu0
        %v1539 = vadd.f32 0.0, %v1538
        %1540 = vmatprep.mubr.bf16.mxu0 0
        %1541 = vmatmul.mubr.bf16.gmra.mrb[0].mxu0 %v1476
        %v1542 = vpop.f32.mrb[0].mxu0
        %v1543 = vadd.f32 0.0, %v1542
        %v1544 = vpop.f32.mrb[0].mxu0
        %v1545 = vadd.f32 0.0, %v1544
        %v1546 = vpop.f32.mrb[0].mxu0
        %v1547 = vadd.f32 0.0, %v1546
        %v1548 = vpop.f32.mrb[0].mxu0
        %v1549 = vadd.f32 0.0, %v1548
        %1550 = vdwg.mxu0
        %v1559 = vunpack.c.l.b16 %v1407
        %v1560 = vunpack.c.l.b16 %v1408
        %v1561 = vunpack.c.l.b16 %v1409
        %v1562 = vunpack.c.l.b16 %v1410
        %v1563 = vunpack.c.l.b16 %v1411
        %v1564 = vunpack.c.l.b16 %v1412
        %v1565 = vunpack.c.l.b16 %v1413
        %v1566 = vunpack.c.l.b16 %v1414
        %v1567 = vpack.c.b16 %v1560, %v1559
        %v1568 = vpack.c.b16 %v1562, %v1561
        %v1569 = vpack.c.b16 %v1564, %v1563
        %v1570 = vpack.c.b16 %v1566, %v1565
        %vm1571 = vcmask 261120
        %v1573 = vsel %vm1571, %v1567, 0
        %v1576 = vsel %vm1571, %v1568, 0
        %v1579 = vsel %vm1571, %v1569, 0
        %v1582 = vsel %vm1571, %v1570, 0
        %1584 = vmatprep.subr.bf16.mxu0 %v1432
        %1585 = vmatpush1.bf16.msra.mxu0 %v1431
        %1586 = vmatprep.subr.bf16.mxu0 %v1434
        %1587 = vmatpush1.bf16.msra.mxu0 %v1433
        %1588 = vmatprep.subr.bf16.mxu0 0
        %1589 = vmatpush1.bf16.msra.mxu0 0
        %1590 = vmatprep.subr.bf16.mxu0 0
        %1591 = vmatpush1.bf16.msra.mxu0 0
        %1592 = vmatprep.subr.bf16.mxu0 0
        %1593 = vmatpush1.bf16.msra.mxu0 0
        %1594 = vmatprep.subr.bf16.mxu0 0
        %1595 = vmatpush1.bf16.msra.mxu0 0
        %1596 = vmatprep.subr.bf16.mxu0 0
        %1597 = vmatpush1.bf16.msra.mxu0 0
        %1598 = vmatprep.subr.bf16.mxu0 0
        %1599 = vmatpush1.bf16.msra.mxu0 0
        %1600 = vmatprep.subr.bf16.mxu0 0
        %1601 = vmatpush1.bf16.msra.mxu0 0
        %1602 = vmatprep.subr.bf16.mxu0 0
        %1603 = vmatpush1.bf16.msra.mxu0 0
        %1604 = vmatprep.subr.bf16.mxu0 0
        %1605 = vmatpush1.bf16.msra.mxu0 0
        %1606 = vmatprep.subr.bf16.mxu0 0
        %1607 = vmatpush1.bf16.msra.mxu0 0
        %1608 = vmatprep.subr.bf16.mxu0 0
        %1609 = vmatpush1.bf16.msra.mxu0 0
        %1610 = vmatprep.subr.bf16.mxu0 0
        %1611 = vmatpush1.bf16.msra.mxu0 0
        %1612 = vmatprep.subr.bf16.mxu0 0
        %1613 = vmatpush1.bf16.msra.mxu0 0
        %1614 = vmatprep.subr.bf16.mxu0 0
        %1615 = vmatpush1.bf16.msra.mxu0 0
        %1616 = vmatprep.mubr.bf16.mxu0 0
        %1617 = vmatmul.mubr.bf16.gmra.mrb[0].mxu0 %v1573
        %v1618 = vpop.f32.mrb[0].mxu0
        %v1619 = vadd.f32 %v1513, %v1618
        %v1620 = vpop.f32.mrb[0].mxu0
        %v1621 = vadd.f32 %v1515, %v1620
        %v1622 = vpop.f32.mrb[0].mxu0
        %v1623 = vadd.f32 %v1517, %v1622
        %v1624 = vpop.f32.mrb[0].mxu0
        %v1625 = vadd.f32 %v1519, %v1624
        %1626 = vmatprep.mubr.bf16.mxu0 0
        %1627 = vmatmul.mubr.bf16.gmra.mrb[0].mxu0 %v1576
        %v1628 = vpop.f32.mrb[0].mxu0
        %v1629 = vadd.f32 %v1523, %v1628
        %v1630 = vpop.f32.mrb[0].mxu0
        %v1631 = vadd.f32 %v1525, %v1630
        %v1632 = vpop.f32.mrb[0].mxu0
        %v1633 = vadd.f32 %v1527, %v1632
        %v1634 = vpop.f32.mrb[0].mxu0
        %v1635 = vadd.f32 %v1529, %v1634
        %1636 = vmatprep.mubr.bf16.mxu0 0
        %1637 = vmatmul.mubr.bf16.gmra.mrb[0].mxu0 %v1579
        %v1638 = vpop.f32.mrb[0].mxu0
        %v1639 = vadd.f32 %v1533, %v1638
        %v1640 = vpop.f32.mrb[0].mxu0
        %v1641 = vadd.f32 %v1535, %v1640
        %v1642 = vpop.f32.mrb[0].mxu0
        %v1643 = vadd.f32 %v1537, %v1642
        %v1644 = vpop.f32.mrb[0].mxu0
        %v1645 = vadd.f32 %v1539, %v1644
        %1646 = vmatprep.mubr.bf16.mxu0 0
        %1647 = vmatmul.mubr.bf16.gmra.mrb[0].mxu0 %v1582
        %v1648 = vpop.f32.mrb[0].mxu0
        %v1649 = vadd.f32 %v1543, %v1648
        %v1650 = vpop.f32.mrb[0].mxu0
        %v1651 = vadd.f32 %v1545, %v1650
        %v1652 = vpop.f32.mrb[0].mxu0
        %v1653 = vadd.f32 %v1547, %v1652
        %v1654 = vpop.f32.mrb[0].mxu0
        %v1655 = vadd.f32 %v1549, %v1654
        %1656 = vdwg.mxu0
        %1658 = vset.pattern.permute.xlu0 0
        %1659 = vperm.xlu0 %1658, %v1423
        %v1660 = vpop.permute.xlu0 %1659
        %1663 = vset.pattern.permute.xlu0 0
        %1664 = vperm.xlu0 %1663, %v1424
        %v1665 = vpop.permute.xlu0 %1664
        %1668 = vset.pattern.permute.xlu0 0
        %1669 = vperm.xlu0 %1668, %v1425
        %v1670 = vpop.permute.xlu0 %1669
        %1673 = vset.pattern.permute.xlu0 0
        %1674 = vperm.xlu0 %1673, %v1426
        %v1675 = vpop.permute.xlu0 %1674
        %1678 = vset.pattern.permute.xlu0 0
        %1679 = vperm.xlu0 %1678, %v1427
        %v1680 = vpop.permute.xlu0 %1679
        %1683 = vset.pattern.permute.xlu0 0
        %1684 = vperm.xlu0 %1683, %v1428
        %v1685 = vpop.permute.xlu0 %1684
        %1688 = vset.pattern.permute.xlu0 0
        %1689 = vperm.xlu0 %1688, %v1429
        %v1690 = vpop.permute.xlu0 %1689
        %1693 = vset.pattern.permute.xlu0 0
        %1694 = vperm.xlu0 %1693, %v1430
        %v1695 = vpop.permute.xlu0 %1694
        %v1697 = vadd.f32 %v1619, %v1660
        %v1698 = vadd.f32 %v1621, %v1660
        %v1699 = vadd.f32 %v1623, %v1665
        %v1700 = vadd.f32 %v1625, %v1665
        %v1701 = vadd.f32 %v1629, %v1670
        %v1702 = vadd.f32 %v1631, %v1670
        %v1703 = vadd.f32 %v1633, %v1675
        %v1704 = vadd.f32 %v1635, %v1675
        %v1705 = vadd.f32 %v1639, %v1680
        %v1706 = vadd.f32 %v1641, %v1680
        %v1707 = vadd.f32 %v1643, %v1685
        %v1708 = vadd.f32 %v1645, %v1685
        %v1709 = vadd.f32 %v1649, %v1690
        %v1710 = vadd.f32 %v1651, %v1690
        %v1711 = vadd.f32 %v1653, %v1695
        %v1712 = vadd.f32 %v1655, %v1695
        %v1713 = vmax.f32 %v1697, 0.0
        %v1714 = vmax.f32 %v1698, 0.0
        %v1715 = vmax.f32 %v1699, 0.0
        %v1716 = vmax.f32 %v1700, 0.0
        %v1717 = vmax.f32 %v1701, 0.0
        %v1718 = vmax.f32 %v1702, 0.0
        %v1719 = vmax.f32 %v1703, 0.0
        %v1720 = vmax.f32 %v1704, 0.0
        %v1721 = vmax.f32 %v1705, 0.0
        %v1722 = vmax.f32 %v1706, 0.0
        %v1723 = vmax.f32 %v1707, 0.0
        %v1724 = vmax.f32 %v1708, 0.0
        %v1725 = vmax.f32 %v1709, 0.0
        %v1726 = vmax.f32 %v1710, 0.0
        %v1727 = vmax.f32 %v1711, 0.0
        %v1728 = vmax.f32 %v1712, 0.0
        %v1729 = vld [vmem:[%s7] sm:$0xf]
        %v1730 = vld [vmem:[%s7 + $0x4] sm:$0xf]
        %v1731 = vld [vmem:[%s7 + $0x8] sm:$0xf]
        %v1732 = vld [vmem:[%s7 + $0xc] sm:$0xf]
        %v1733 = vld [vmem:[%s8] sm:$0xff]
        %v1734 = vld [vmem:[%s8 + $0x8] sm:$0xff]
        %v1735 = vld [vmem:[%s8 + $0x10] sm:$0xff]
        %v1736 = vld [vmem:[%s8 + $0x18] sm:$0xff]
        %v1737 = vpack.c.bf16 %v1715, %v1713
        %v1738 = vpack.c.bf16 %v1716, %v1714
        %v1739 = vpack.c.bf16 %v1719, %v1717
        %v1740 = vpack.c.bf16 %v1720, %v1718
        %v1741 = vpack.c.bf16 %v1723, %v1721
        %v1742 = vpack.c.bf16 %v1724, %v1722
        %v1743 = vpack.c.bf16 %v1727, %v1725
        %v1744 = vpack.c.bf16 %v1728, %v1726
        %1746 = vset.pattern.permute.xlu0 0
        %1747 = vperm.xlu0 %1746, %v1733
        %v1748 = vpop.permute.xlu0 %1747
        %1751 = vset.pattern.permute.xlu0 0
        %1752 = vperm.xlu0 %1751, %v1734
        %v1753 = vpop.permute.xlu0 %1752
        %1756 = vset.pattern.permute.xlu0 0
        %1757 = vperm.xlu0 %1756, %v1735
        %v1758 = vpop.permute.xlu0 %1757
        %1761 = vset.pattern.permute.xlu0 0
        %1762 = vperm.xlu0 %1761, %v1736
        %v1763 = vpop.permute.xlu0 %1762
        %v1769 = vunpack.c.l.b16 %v1729
        %v1770 = vunpack.c.l.b16 %v1730
        %v1771 = vunpack.c.l.b16 %v1731
        %v1772 = vunpack.c.l.b16 %v1732
        %v1773 = vpack.c.b16 %v1770, %v1769
        %v1774 = vpack.c.b16 %v1772, %v1771
        %v1776 = vsel %vm1339, %v1773, 0
        %v1779 = vsel %vm1339, %v1774, 0
        %1781 = vmatprep.subr.bf16.mxu0 %v1738
        %1782 = vmatpush1.bf16.msra.mxu0 %v1737
        %1783 = vmatprep.subr.bf16.mxu0 %v1740
        %1784 = vmatpush1.bf16.msra.mxu0 %v1739
        %1785 = vmatprep.subr.bf16.mxu0 %v1742
        %1786 = vmatpush1.bf16.msra.mxu0 %v1741
        %1787 = vmatprep.subr.bf16.mxu0 %v1744
        %1788 = vmatpush1.bf16.msra.mxu0 %v1743
        %1789 = vmatprep.subr.bf16.mxu0 0
        %1790 = vmatpush1.bf16.msra.mxu0 0
        %1791 = vmatprep.subr.bf16.mxu0 0
        %1792 = vmatpush1.bf16.msra.mxu0 0
        %1793 = vmatprep.subr.bf16.mxu0 0
        %1794 = vmatpush1.bf16.msra.mxu0 0
        %1795 = vmatprep.subr.bf16.mxu0 0
        %1796 = vmatpush1.bf16.msra.mxu0 0
        %1797 = vmatprep.subr.bf16.mxu0 0
        %1798 = vmatpush1.bf16.msra.mxu0 0
        %1799 = vmatprep.subr.bf16.mxu0 0
        %1800 = vmatpush1.bf16.msra.mxu0 0
        %1801 = vmatprep.subr.bf16.mxu0 0
        %1802 = vmatpush1.bf16.msra.mxu0 0
        %1803 = vmatprep.subr.bf16.mxu0 0
        %1804 = vmatpush1.bf16.msra.mxu0 0
        %1805 = vmatprep.subr.bf16.mxu0 0
        %1806 = vmatpush1.bf16.msra.mxu0 0
        %1807 = vmatprep.subr.bf16.mxu0 0
        %1808 = vmatpush1.bf16.msra.mxu0 0
        %1809 = vmatprep.subr.bf16.mxu0 0
        %1810 = vmatpush1.bf16.msra.mxu0 0
        %1811 = vmatprep.subr.bf16.mxu0 0
        %1812 = vmatpush1.bf16.msra.mxu0 0
        %1813 = vmatprep.mubr.bf16.mxu0 0
        %1814 = vmatmul.mubr.bf16.gmra.mrb[0].mxu0 %v1776
        %v1815 = vpop.f32.mrb[0].mxu0
        %v1816 = vadd.f32 %v1748, %v1815
        %v1817 = vpop.f32.mrb[0].mxu0
        %v1818 = vadd.f32 %v1748, %v1817
        %v1819 = vpop.f32.mrb[0].mxu0
        %v1820 = vadd.f32 %v1753, %v1819
        %v1821 = vpop.f32.mrb[0].mxu0
        %v1822 = vadd.f32 %v1753, %v1821
        %1823 = vmatprep.mubr.bf16.mxu0 0
        %1824 = vmatmul.mubr.bf16.gmra.mrb[0].mxu0 %v1779
        %v1825 = vpop.f32.mrb[0].mxu0
        %v1826 = vadd.f32 %v1758, %v1825
        %v1827 = vpop.f32.mrb[0].mxu0
        %v1828 = vadd.f32 %v1758, %v1827
        %v1829 = vpop.f32.mrb[0].mxu0
        %v1830 = vadd.f32 %v1763, %v1829
        %v1831 = vpop.f32.mrb[0].mxu0
        %v1832 = vadd.f32 %v1763, %v1831
        %1833 = vdwg.mxu0
        %v1834 = vmax.f32 %v1816, 0.0
        %v1835 = vmax.f32 %v1818, 0.0
        %v1836 = vmax.f32 %v1820, 0.0
        %v1837 = vmax.f32 %v1822, 0.0
        %v1838 = vmax.f32 %v1826, 0.0
        %v1839 = vmax.f32 %v1828, 0.0
        %v1840 = vmax.f32 %v1830, 0.0
        %v1841 = vmax.f32 %v1832, 0.0
        %1842 = vst [vmem:[%s406] sm:$0xff] %v1834
        %1843 = vst [vmem:[%s406 + $0x8] sm:$0xff] %v1835
        %1844 = vst [vmem:[%s406 + $0x10] sm:$0xff] %v1836
        %1845 = vst [vmem:[%s406 + $0x18] sm:$0xff] %v1837
        %1846 = vst [vmem:[%s406 + $0x20] sm:$0xff] %v1838
        %1847 = vst [vmem:[%s406 + $0x28] sm:$0xff] %v1839
        %1848 = vst [vmem:[%s406 + $0x30] sm:$0xff] %v1840
        %1849 = vst [vmem:[%s406 + $0x38] sm:$0xff] %v1841
        %s1850 = sand.u32 %s258, 1
        %s1851 = scalar_lea.sflag [#allocation3], %s1850
        %s1852 = sand.u32 %s258, 1
        %s1853 = smul.addr %s1852, 64
        %s1854 = scalar_lea.vmem [#allocation2], %s1853
        // Predicated region
        $region57: #{tpu_custom_call.1} parent=55 // pred_check
          %p1855 = pneg %p268
        $region58: #{tpu_custom_call.1} parent=55 // pred_check_branch
          %1857 = sbr.rel (%p1855) target = $region60
        $region59: #{tpu_custom_call.1} parent=55 // pred_region
          %s1858 = smul.u32 2, %s28
          %s1860 = ssub.s32 1024, 1024
          %1861 = vsyncadd %s1851, %s1860
          %s1862 = smul.addr %s27, 8
          %s1863 = sadd.s32 %s1858, %s1862
          %s1864 = smul.addr %s1863, 128
          %s1865 = scalar_lea.hbm %s9, %s1864
          %s1866 = sshll.u32 %s1854, 4
          %s1867 = int_to_ptr.vmem [resolvable:$true] %s1866
          %1872 = dma.vmem_to_hbm [thread:$0]  %s1867, 1024, %s1865, %s1851, 256, 256, 16
        $region60: #{tpu_custom_call.1} parent=55 // pred_fallthru
          _
      $region56: #{tpu_custom_call.1} parent=5 // pred_fallthru
        _
      %p1873 = scmp.le.s32.totalorder 2, %s18
      // Predicated region
      $region61: #{tpu_custom_call.1} parent=5 // pred_check
        %p1874 = pneg %p1873
      $region62: #{tpu_custom_call.1} parent=5 // pred_check_branch
        %1876 = sbr.rel (%p1874) target = $region64
      $region63: #{tpu_custom_call.1} parent=5 // pred_region
        %s1877 = ssub.s32 %s18, 2
        // Predicated region
        $region65: #{tpu_custom_call.1} parent=63 // pred_check
          %p1878 = pneg %p274
        $region66: #{tpu_custom_call.1} parent=63 // pred_check_branch
          %1880 = sbr.rel (%p1878) target = $region68
        $region67: #{tpu_custom_call.1} parent=63 // pred_region
          %s1881 = sand.u32 %s259, 1
          %s1882 = scalar_lea.sflag [#allocation3], %s1881
          %s1883 = sand.u32 %s259, 1
          %s1884 = smul.addr %s1883, 64
          %s1885 = scalar_lea.vmem [#allocation2], %s1884
          %1886 = dma.done %s1882, 1024
        $region68: #{tpu_custom_call.1} parent=63 // pred_fallthru
          _
      $region64: #{tpu_custom_call.1} parent=5 // pred_fallthru
        _
    $region6: #{tpu_custom_call.1} parent=1 // loop_footer
      %s22 = sadd.s32 1, %s18
    $region7: #{tpu_custom_call.1} parent=1 // loop_footer_branch
      %17 = sbr.rel target = $region3
    $region8: #{tpu_custom_call.1} parent=1 // loop_exit
      _
    %1887 = vsyncpa [#allocation3], 1
    %s1888 = scalar_lea.sflag [#allocation3], 1
    %1889 = vsyncpa %s1888, 1

</llo_original>
